<compile_context>
chip_gen: v5e
topology: v5e:2x2
jax: 0.10.0
libtpu: 0.0.40
codegen_flags: <defaults>
</compile_context>

<pallas_src>
import functools

import jax
import jax.numpy as jnp
from jax.experimental import pallas as pl
from jax.experimental.pallas import tpu as pltpu


def _round_up(n: int, m: int) -> int:
    return ((n + m - 1) // m) * m


def pack_params(growth_rates, w1, b1, w2, b2):
    """Flatten all module parameters into one 1-D f32 buffer for SMEM.

    Layout: [W1 (D*H, k-major) | b1 (H) | W2 (H*D, j-major) | b2 (D) | growth (D)]
    """
    gr = jnp.asarray(growth_rates, jnp.float32).reshape(-1)    # (D,)
    w1 = jnp.asarray(w1, jnp.float32)                          # (D, H)
    b1 = jnp.asarray(b1, jnp.float32).reshape(-1)              # (H,)
    w2 = jnp.asarray(w2, jnp.float32)                          # (H, D)
    b2 = jnp.asarray(b2, jnp.float32).reshape(-1)              # (D,)
    return jnp.concatenate([w1.reshape(-1), b1, w2.reshape(-1), b2, gr])


def _hybrid_dynamics_kernel(params_ref, x_ref, o_ref, *, d, h):
    """Fused hybrid Lotka-Volterra RHS on per-feature, lane-dense planes.

    params_ref : SMEM f32[2*d*h + h + 2*d] flat parameter buffer (see pack_params)
    x_ref      : VMEM f32[d, TR, 128]  feature planes, batch over (sublane, lane)
    o_ref      : VMEM    [d, TR, 128]  dx/dt planes
    """
    w1_off = 0
    b1_off = d * h
    w2_off = b1_off + h
    b2_off = w2_off + h * d
    gr_off = b2_off + d

    # Load the d feature planes once; each is a fully packed [TR, 128] slab.
    x = [x_ref[k] for k in range(d)]

    # Known term + output bias.  Two partial accumulators per feature break
    # the serial accumulation chain over the H hidden units.
    acc_a = [params_ref[gr_off + i] * x[i] + params_ref[b2_off + i] for i in range(d)]
    acc_b = [jnp.zeros_like(x[i]) for i in range(d)]

    # Fused latent MLP: for each hidden unit j, build the full-plane activation
    # and immediately scatter it into the d output planes with scalar weights
    # (scalar slot feeds the VPU; no lane/sublane broadcasts, no [H,TB] temps).
    for j in range(h):
        hj = x[0] * params_ref[w1_off + j] + params_ref[b1_off + j]
        for k in range(1, d):
            hj = hj + x[k] * params_ref[w1_off + k * h + j]
        hj = jnp.tanh(hj)  # EUP slot
        # TODO(synk): if a bundle dump shows EUP (tanh) as the binding slot,
        # switch to a polynomial tanh on the VPU (f32-safe on v5e too).
        acc = acc_a if (j % 2 == 0) else acc_b
        for i in range(d):
            acc[i] = acc[i] + hj * params_ref[w2_off + j * d + i]

    for i in range(d):
        o_ref[i] = (acc_a[i] + acc_b[i]).astype(o_ref.dtype)


def _rhs_feature_major(x_planes, params, *, tile_elems):
    """RHS on feature-major planes x_planes: [D, NB, 128] (f32)."""
    D, NB, L = x_planes.shape
    P = params.shape[0]
    H = (P - 2 * D) // (2 * D + 1)   # P = 2*D*H + H + 2*D

    # Rows (of 128 lanes) per batch tile; multiple of 8, capped by the batch.
    tr = max(8, (max(int(tile_elems), 1024) // 1024) * 8)
    tr = min(tr, _round_up(NB, 8))
    nb_pad = _round_up(NB, tr)
    if nb_pad != NB:
        x_planes = jnp.pad(x_planes, ((0, 0), (0, nb_pad - NB), (0, 0)))
    grid = (nb_pad // tr,)

    out = pl.pallas_call(
        functools.partial(_hybrid_dynamics_kernel, d=D, h=H),
        out_shape=jax.ShapeDtypeStruct((D, nb_pad, L), x_planes.dtype),
        grid_spec=pltpu.PrefetchScalarGridSpec(
            num_scalar_prefetch=0,
            grid=grid,
            in_specs=[
                # Flat scalar parameters, resident in SMEM for the whole call.
                pl.BlockSpec(memory_space=pltpu.MemorySpace.SMEM),
                # State tile: D feature planes of (tr, 128) each.
                pl.BlockSpec((D, tr, L), lambda i: (0, i, 0)),
            ],
            out_specs=pl.BlockSpec((D, tr, L), lambda i: (0, i, 0)),
        ),
        compiler_params=pltpu.CompilerParams(
            # "parallel" lets v7x shard batch tiles across its 2 TensorCores;
            # measured no-op on single-core v5e/v6e but harmless.
            dimension_semantics=("parallel",),
            # Explicit scoped-VMEM cap: safe on every generation (v7x total is
            # 64 MiB) and leaves headroom for large tile_elems.
            vmem_limit_bytes=32 * 1024 * 1024,
        ),
    )(params, x_planes)

    if nb_pad != NB:
        out = out[:, :NB, :]
    return out


@functools.partial(jax.jit, static_argnames=("tile_elems",))
def _hybrid_dynamics_impl(x, growth_rates, w1, b1, w2, b2, *, tile_elems):
    B, D = x.shape
    params = pack_params(growth_rates, w1, b1, w2, b2)

    b_pad = _round_up(B, 128)
    nb = b_pad // 128
    # Single transpose + pad into the lane-dense feature-major plane layout.
    # TODO(synk): for a full ODE solve, keep the state in this [D, NB, 128]
    # layout across time steps (use hybrid_dynamics_feature_major) and
    # eventually move the integrator loop into the kernel so the state stays
    # resident in VMEM; this layout change dominates a single RHS evaluation.
    x_planes = jnp.pad(x.astype(jnp.float32).T, ((0, 0), (0, b_pad - B)))
    x_planes = x_planes.reshape(D, nb, 128)

    out_planes = _rhs_feature_major(x_planes, params, tile_elems=tile_elems)
    return out_planes.reshape(D, b_pad)[:, :B].T.astype(x.dtype)


def hybrid_dynamics(t, x, growth_rates, w1, b1, w2, b2, *, tile_elems=65536):
    """forward(t, x) = growth_rates * x + latent(t, x).   x: [B, D] batch-major."""
    del t  # latent MLP is autonomous (time-independent) in the hybrid-LV setup
    return _hybrid_dynamics_impl(x, growth_rates, w1, b1, w2, b2,
                                 tile_elems=tile_elems)


@functools.partial(jax.jit, static_argnames=("tile_elems",))
def hybrid_dynamics_feature_major(t, x_planes, params, *, tile_elems=65536):
    """Solver-friendly entry point on the feature-major layout.

    x_planes: [D, NB, 128] f32 (batch padded to a multiple of 128, features on
    the leading axis).  Keep the ODE state in this layout across time steps so
    the batch-major transpose is paid only once, outside the time loop.
    """
    del t
    return _rhs_feature_major(x_planes, params, tile_elems=tile_elems)


def reference_forward(t, x, growth_rates, w1, b1, w2, b2):
    """Pure-JAX reference mirroring the PyTorch module semantics."""
    del t
    hp = jax.lax.Precision.HIGHEST
    known_dx = growth_rates * x
    hid = jnp.tanh(jnp.dot(x, w1, precision=hp) + b1)
    latent_dx = jnp.dot(hid, w2, precision=hp) + b2
    return known_dx + latent_dx


if __name__ == "__main__":
    key = jax.random.PRNGKey(0)
    k_x1, k_x2, k_gr, k_w1, k_b1, k_w2, k_b2 = jax.random.split(key, 7)

    D, H = 4, 32  # state_dim (species), latent hidden width
    t = jnp.float32(0.0)

    growth_rates = jax.random.normal(k_gr, (1, D), dtype=jnp.float32)
    w1 = jax.random.normal(k_w1, (D, H), dtype=jnp.float32) * 0.1
    b1 = jax.random.normal(k_b1, (1, H), dtype=jnp.float32) * 0.1
    w2 = jax.random.normal(k_w2, (H, D), dtype=jnp.float32) * 0.1
    b2 = jax.random.normal(k_b2, (1, D), dtype=jnp.float32) * 0.1

    # Case 1: tiny batch (module-scale usage), single tile.
    B1 = 8
    x1 = jax.random.normal(k_x1, (B1, D), dtype=jnp.float32)
    out1 = jax.block_until_ready(hybrid_dynamics(t, x1, growth_rates, w1, b1, w2, b2))
    ref1 = reference_forward(t, x1, growth_rates, w1, b1, w2, b2)
    assert out1.shape == (B1, D) and out1.dtype == jnp.float32
    assert jnp.allclose(out1, ref1, atol=2e-5, rtol=2e-5), "mismatch vs reference (B=8)"

    # Case 2: multi-tile grid (3 batch tiles of 1024 elements, parallel axis).
    B2 = 2500
    x2 = jax.random.normal(k_x2, (B2, D), dtype=jnp.float32)
    out2 = jax.block_until_ready(
        hybrid_dynamics(t, x2, growth_rates, w1, b1, w2, b2, tile_elems=1024))
    ref2 = reference_forward(t, x2, growth_rates, w1, b1, w2, b2)
    assert out2.shape == (B2, D) and out2.dtype == jnp.float32
    assert jnp.allclose(out2, ref2, atol=2e-5, rtol=2e-5), "mismatch vs reference (B=2500)"

    # Case 3: feature-major (solver) path on the same data — transpose paid once.
    b_pad = ((B2 + 127) // 128) * 128
    x2_planes = jnp.pad(x2.T, ((0, 0), (0, b_pad - B2))).reshape(D, b_pad // 128, 128)
    params = pack_params(growth_rates, w1, b1, w2, b2)
    out3_planes = jax.block_until_ready(
        hybrid_dynamics_feature_major(t, x2_planes, params, tile_elems=1024))
    out3 = out3_planes.reshape(D, b_pad)[:, :B2].T
    assert jnp.allclose(out3, ref2, atol=2e-5, rtol=2e-5), "mismatch vs reference (planes)"

    print("KERNEL_OK")
</pallas_src>

<mosaic_0001>
module attributes {stable_mosaic.version = 11 : i64} {
  func.func @_hybrid_dynamics_kernel(%arg0: i32, %arg1: memref<296xf32, #tpu.memory_space<smem>>, %arg2: memref<4x8x128xf32, #tpu.memory_space<vmem>>, %arg3: memref<4x8x128xf32, #tpu.memory_space<vmem>>) attributes {dimension_semantics = [#tpu.dimension_semantics<parallel>], iteration_bounds = array<i64: 1>, scalar_prefetch = 0 : i64, scratch_operands = 0 : i64, tpu.core_type = #tpu.core_type<tc>, window_params = [{transform_indices = @transform_0, window_bounds = array<i64: 296>}, {transform_indices = @transform_1, window_bounds = array<i64: 4, 8, 128>}, {transform_indices = @transform_2, window_bounds = array<i64: 4, 8, 128>}]} {
    %c0 = arith.constant 0 : index
    %c0_0 = arith.constant 0 : index
    %c0_1 = arith.constant 0 : index
    %0 = vector.load %arg2[%c0, %c0_0, %c0_1] : memref<4x8x128xf32, #tpu.memory_space<vmem>>, vector<1x8x128xf32>
    %1 = vector.shape_cast %0 : vector<1x8x128xf32> to vector<8x128xf32>
    %c1 = arith.constant 1 : index
    %c0_2 = arith.constant 0 : index
    %c0_3 = arith.constant 0 : index
    %2 = vector.load %arg2[%c1, %c0_2, %c0_3] : memref<4x8x128xf32, #tpu.memory_space<vmem>>, vector<1x8x128xf32>
    %3 = vector.shape_cast %2 : vector<1x8x128xf32> to vector<8x128xf32>
    %c2 = arith.constant 2 : index
    %c0_4 = arith.constant 0 : index
    %c0_5 = arith.constant 0 : index
    %4 = vector.load %arg2[%c2, %c0_4, %c0_5] : memref<4x8x128xf32, #tpu.memory_space<vmem>>, vector<1x8x128xf32>
    %5 = vector.shape_cast %4 : vector<1x8x128xf32> to vector<8x128xf32>
    %c3 = arith.constant 3 : index
    %c0_6 = arith.constant 0 : index
    %c0_7 = arith.constant 0 : index
    %6 = vector.load %arg2[%c3, %c0_6, %c0_7] : memref<4x8x128xf32, #tpu.memory_space<vmem>>, vector<1x8x128xf32>
    %7 = vector.shape_cast %6 : vector<1x8x128xf32> to vector<8x128xf32>
    %c292 = arith.constant 292 : index
    %8 = memref.load %arg1[%c292] : memref<296xf32, #tpu.memory_space<smem>>
    %9 = vector.broadcast %8 : f32 to vector<8x128xf32>
    %10 = arith.mulf %9, %1 : vector<8x128xf32>
    %c288 = arith.constant 288 : index
    %11 = memref.load %arg1[%c288] : memref<296xf32, #tpu.memory_space<smem>>
    %12 = vector.broadcast %11 : f32 to vector<8x128xf32>
    %13 = arith.addf %10, %12 : vector<8x128xf32>
    %c293 = arith.constant 293 : index
    %14 = memref.load %arg1[%c293] : memref<296xf32, #tpu.memory_space<smem>>
    %15 = vector.broadcast %14 : f32 to vector<8x128xf32>
    %16 = arith.mulf %15, %3 : vector<8x128xf32>
    %c289 = arith.constant 289 : index
    %17 = memref.load %arg1[%c289] : memref<296xf32, #tpu.memory_space<smem>>
    %18 = vector.broadcast %17 : f32 to vector<8x128xf32>
    %19 = arith.addf %16, %18 : vector<8x128xf32>
    %c294 = arith.constant 294 : index
    %20 = memref.load %arg1[%c294] : memref<296xf32, #tpu.memory_space<smem>>
    %21 = vector.broadcast %20 : f32 to vector<8x128xf32>
    %22 = arith.mulf %21, %5 : vector<8x128xf32>
    %c290 = arith.constant 290 : index
    %23 = memref.load %arg1[%c290] : memref<296xf32, #tpu.memory_space<smem>>
    %24 = vector.broadcast %23 : f32 to vector<8x128xf32>
    %25 = arith.addf %22, %24 : vector<8x128xf32>
    %c295 = arith.constant 295 : index
    %26 = memref.load %arg1[%c295] : memref<296xf32, #tpu.memory_space<smem>>
    %27 = vector.broadcast %26 : f32 to vector<8x128xf32>
    %28 = arith.mulf %27, %7 : vector<8x128xf32>
    %c291 = arith.constant 291 : index
    %29 = memref.load %arg1[%c291] : memref<296xf32, #tpu.memory_space<smem>>
    %30 = vector.broadcast %29 : f32 to vector<8x128xf32>
    %31 = arith.addf %28, %30 : vector<8x128xf32>
    %cst = arith.constant 0.000000e+00 : f32
    %32 = vector.broadcast %cst : f32 to vector<8x128xf32>
    %cst_8 = arith.constant 0.000000e+00 : f32
    %33 = vector.broadcast %cst_8 : f32 to vector<8x128xf32>
    %cst_9 = arith.constant 0.000000e+00 : f32
    %34 = vector.broadcast %cst_9 : f32 to vector<8x128xf32>
    %cst_10 = arith.constant 0.000000e+00 : f32
    %35 = vector.broadcast %cst_10 : f32 to vector<8x128xf32>
    %c0_11 = arith.constant 0 : index
    %36 = memref.load %arg1[%c0_11] : memref<296xf32, #tpu.memory_space<smem>>
    %37 = vector.broadcast %36 : f32 to vector<8x128xf32>
    %38 = arith.mulf %1, %37 : vector<8x128xf32>
    %c128 = arith.constant 128 : index
    %39 = memref.load %arg1[%c128] : memref<296xf32, #tpu.memory_space<smem>>
    %40 = vector.broadcast %39 : f32 to vector<8x128xf32>
    %41 = arith.addf %38, %40 : vector<8x128xf32>
    %c32 = arith.constant 32 : index
    %42 = memref.load %arg1[%c32] : memref<296xf32, #tpu.memory_space<smem>>
    %43 = vector.broadcast %42 : f32 to vector<8x128xf32>
    %44 = arith.mulf %3, %43 : vector<8x128xf32>
    %45 = arith.addf %41, %44 : vector<8x128xf32>
    %c64 = arith.constant 64 : index
    %46 = memref.load %arg1[%c64] : memref<296xf32, #tpu.memory_space<smem>>
    %47 = vector.broadcast %46 : f32 to vector<8x128xf32>
    %48 = arith.mulf %5, %47 : vector<8x128xf32>
    %49 = arith.addf %45, %48 : vector<8x128xf32>
    %c96 = arith.constant 96 : index
    %50 = memref.load %arg1[%c96] : memref<296xf32, #tpu.memory_space<smem>>
    %51 = vector.broadcast %50 : f32 to vector<8x128xf32>
    %52 = arith.mulf %7, %51 : vector<8x128xf32>
    %53 = arith.addf %49, %52 : vector<8x128xf32>
    %54 = math.tanh %53 : vector<8x128xf32>
    %c160 = arith.constant 160 : index
    %55 = memref.load %arg1[%c160] : memref<296xf32, #tpu.memory_space<smem>>
    %56 = vector.broadcast %55 : f32 to vector<8x128xf32>
    %57 = arith.mulf %54, %56 : vector<8x128xf32>
    %58 = arith.addf %13, %57 : vector<8x128xf32>
    %c161 = arith.constant 161 : index
    %59 = memref.load %arg1[%c161] : memref<296xf32, #tpu.memory_space<smem>>
    %60 = vector.broadcast %59 : f32 to vector<8x128xf32>
    %61 = arith.mulf %54, %60 : vector<8x128xf32>
    %62 = arith.addf %19, %61 : vector<8x128xf32>
    %c162 = arith.constant 162 : index
    %63 = memref.load %arg1[%c162] : memref<296xf32, #tpu.memory_space<smem>>
    %64 = vector.broadcast %63 : f32 to vector<8x128xf32>
    %65 = arith.mulf %54, %64 : vector<8x128xf32>
    %66 = arith.addf %25, %65 : vector<8x128xf32>
    %c163 = arith.constant 163 : index
    %67 = memref.load %arg1[%c163] : memref<296xf32, #tpu.memory_space<smem>>
    %68 = vector.broadcast %67 : f32 to vector<8x128xf32>
    %69 = arith.mulf %54, %68 : vector<8x128xf32>
    %70 = arith.addf %31, %69 : vector<8x128xf32>
    %c1_12 = arith.constant 1 : index
    %71 = memref.load %arg1[%c1_12] : memref<296xf32, #tpu.memory_space<smem>>
    %72 = vector.broadcast %71 : f32 to vector<8x128xf32>
    %73 = arith.mulf %1, %72 : vector<8x128xf32>
    %c129 = arith.constant 129 : index
    %74 = memref.load %arg1[%c129] : memref<296xf32, #tpu.memory_space<smem>>
    %75 = vector.broadcast %74 : f32 to vector<8x128xf32>
    %76 = arith.addf %73, %75 : vector<8x128xf32>
    %c33 = arith.constant 33 : index
    %77 = memref.load %arg1[%c33] : memref<296xf32, #tpu.memory_space<smem>>
    %78 = vector.broadcast %77 : f32 to vector<8x128xf32>
    %79 = arith.mulf %3, %78 : vector<8x128xf32>
    %80 = arith.addf %76, %79 : vector<8x128xf32>
    %c65 = arith.constant 65 : index
    %81 = memref.load %arg1[%c65] : memref<296xf32, #tpu.memory_space<smem>>
    %82 = vector.broadcast %81 : f32 to vector<8x128xf32>
    %83 = arith.mulf %5, %82 : vector<8x128xf32>
    %84 = arith.addf %80, %83 : vector<8x128xf32>
    %c97 = arith.constant 97 : index
    %85 = memref.load %arg1[%c97] : memref<296xf32, #tpu.memory_space<smem>>
    %86 = vector.broadcast %85 : f32 to vector<8x128xf32>
    %87 = arith.mulf %7, %86 : vector<8x128xf32>
    %88 = arith.addf %84, %87 : vector<8x128xf32>
    %89 = math.tanh %88 : vector<8x128xf32>
    %c164 = arith.constant 164 : index
    %90 = memref.load %arg1[%c164] : memref<296xf32, #tpu.memory_space<smem>>
    %91 = vector.broadcast %90 : f32 to vector<8x128xf32>
    %92 = arith.mulf %89, %91 : vector<8x128xf32>
    %93 = arith.addf %32, %92 : vector<8x128xf32>
    %c165 = arith.constant 165 : index
    %94 = memref.load %arg1[%c165] : memref<296xf32, #tpu.memory_space<smem>>
    %95 = vector.broadcast %94 : f32 to vector<8x128xf32>
    %96 = arith.mulf %89, %95 : vector<8x128xf32>
    %97 = arith.addf %33, %96 : vector<8x128xf32>
    %c166 = arith.constant 166 : index
    %98 = memref.load %arg1[%c166] : memref<296xf32, #tpu.memory_space<smem>>
    %99 = vector.broadcast %98 : f32 to vector<8x128xf32>
    %100 = arith.mulf %89, %99 : vector<8x128xf32>
    %101 = arith.addf %34, %100 : vector<8x128xf32>
    %c167 = arith.constant 167 : index
    %102 = memref.load %arg1[%c167] : memref<296xf32, #tpu.memory_space<smem>>
    %103 = vector.broadcast %102 : f32 to vector<8x128xf32>
    %104 = arith.mulf %89, %103 : vector<8x128xf32>
    %105 = arith.addf %35, %104 : vector<8x128xf32>
    %c2_13 = arith.constant 2 : index
    %106 = memref.load %arg1[%c2_13] : memref<296xf32, #tpu.memory_space<smem>>
    %107 = vector.broadcast %106 : f32 to vector<8x128xf32>
    %108 = arith.mulf %1, %107 : vector<8x128xf32>
    %c130 = arith.constant 130 : index
    %109 = memref.load %arg1[%c130] : memref<296xf32, #tpu.memory_space<smem>>
    %110 = vector.broadcast %109 : f32 to vector<8x128xf32>
    %111 = arith.addf %108, %110 : vector<8x128xf32>
    %c34 = arith.constant 34 : index
    %112 = memref.load %arg1[%c34] : memref<296xf32, #tpu.memory_space<smem>>
    %113 = vector.broadcast %112 : f32 to vector<8x128xf32>
    %114 = arith.mulf %3, %113 : vector<8x128xf32>
    %115 = arith.addf %111, %114 : vector<8x128xf32>
    %c66 = arith.constant 66 : index
    %116 = memref.load %arg1[%c66] : memref<296xf32, #tpu.memory_space<smem>>
    %117 = vector.broadcast %116 : f32 to vector<8x128xf32>
    %118 = arith.mulf %5, %117 : vector<8x128xf32>
    %119 = arith.addf %115, %118 : vector<8x128xf32>
    %c98 = arith.constant 98 : index
    %120 = memref.load %arg1[%c98] : memref<296xf32, #tpu.memory_space<smem>>
    %121 = vector.broadcast %120 : f32 to vector<8x128xf32>
    %122 = arith.mulf %7, %121 : vector<8x128xf32>
    %123 = arith.addf %119, %122 : vector<8x128xf32>
    %124 = math.tanh %123 : vector<8x128xf32>
    %c168 = arith.constant 168 : index
    %125 = memref.load %arg1[%c168] : memref<296xf32, #tpu.memory_space<smem>>
    %126 = vector.broadcast %125 : f32 to vector<8x128xf32>
    %127 = arith.mulf %124, %126 : vector<8x128xf32>
    %128 = arith.addf %58, %127 : vector<8x128xf32>
    %c169 = arith.constant 169 : index
    %129 = memref.load %arg1[%c169] : memref<296xf32, #tpu.memory_space<smem>>
    %130 = vector.broadcast %129 : f32 to vector<8x128xf32>
    %131 = arith.mulf %124, %130 : vector<8x128xf32>
    %132 = arith.addf %62, %131 : vector<8x128xf32>
    %c170 = arith.constant 170 : index
    %133 = memref.load %arg1[%c170] : memref<296xf32, #tpu.memory_space<smem>>
    %134 = vector.broadcast %133 : f32 to vector<8x128xf32>
    %135 = arith.mulf %124, %134 : vector<8x128xf32>
    %136 = arith.addf %66, %135 : vector<8x128xf32>
    %c171 = arith.constant 171 : index
    %137 = memref.load %arg1[%c171] : memref<296xf32, #tpu.memory_space<smem>>
    %138 = vector.broadcast %137 : f32 to vector<8x128xf32>
    %139 = arith.mulf %124, %138 : vector<8x128xf32>
    %140 = arith.addf %70, %139 : vector<8x128xf32>
    %c3_14 = arith.constant 3 : index
    %141 = memref.load %arg1[%c3_14] : memref<296xf32, #tpu.memory_space<smem>>
    %142 = vector.broadcast %141 : f32 to vector<8x128xf32>
    %143 = arith.mulf %1, %142 : vector<8x128xf32>
    %c131 = arith.constant 131 : index
    %144 = memref.load %arg1[%c131] : memref<296xf32, #tpu.memory_space<smem>>
    %145 = vector.broadcast %144 : f32 to vector<8x128xf32>
    %146 = arith.addf %143, %145 : vector<8x128xf32>
    %c35 = arith.constant 35 : index
    %147 = memref.load %arg1[%c35] : memref<296xf32, #tpu.memory_space<smem>>
    %148 = vector.broadcast %147 : f32 to vector<8x128xf32>
    %149 = arith.mulf %3, %148 : vector<8x128xf32>
    %150 = arith.addf %146, %149 : vector<8x128xf32>
    %c67 = arith.constant 67 : index
    %151 = memref.load %arg1[%c67] : memref<296xf32, #tpu.memory_space<smem>>
    %152 = vector.broadcast %151 : f32 to vector<8x128xf32>
    %153 = arith.mulf %5, %152 : vector<8x128xf32>
    %154 = arith.addf %150, %153 : vector<8x128xf32>
    %c99 = arith.constant 99 : index
    %155 = memref.load %arg1[%c99] : memref<296xf32, #tpu.memory_space<smem>>
    %156 = vector.broadcast %155 : f32 to vector<8x128xf32>
    %157 = arith.mulf %7, %156 : vector<8x128xf32>
    %158 = arith.addf %154, %157 : vector<8x128xf32>
    %159 = math.tanh %158 : vector<8x128xf32>
    %c172 = arith.constant 172 : index
    %160 = memref.load %arg1[%c172] : memref<296xf32, #tpu.memory_space<smem>>
    %161 = vector.broadcast %160 : f32 to vector<8x128xf32>
    %162 = arith.mulf %159, %161 : vector<8x128xf32>
    %163 = arith.addf %93, %162 : vector<8x128xf32>
    %c173 = arith.constant 173 : index
    %164 = memref.load %arg1[%c173] : memref<296xf32, #tpu.memory_space<smem>>
    %165 = vector.broadcast %164 : f32 to vector<8x128xf32>
    %166 = arith.mulf %159, %165 : vector<8x128xf32>
    %167 = arith.addf %97, %166 : vector<8x128xf32>
    %c174 = arith.constant 174 : index
    %168 = memref.load %arg1[%c174] : memref<296xf32, #tpu.memory_space<smem>>
    %169 = vector.broadcast %168 : f32 to vector<8x128xf32>
    %170 = arith.mulf %159, %169 : vector<8x128xf32>
    %171 = arith.addf %101, %170 : vector<8x128xf32>
    %c175 = arith.constant 175 : index
    %172 = memref.load %arg1[%c175] : memref<296xf32, #tpu.memory_space<smem>>
    %173 = vector.broadcast %172 : f32 to vector<8x128xf32>
    %174 = arith.mulf %159, %173 : vector<8x128xf32>
    %175 = arith.addf %105, %174 : vector<8x128xf32>
    %c4 = arith.constant 4 : index
    %176 = memref.load %arg1[%c4] : memref<296xf32, #tpu.memory_space<smem>>
    %177 = vector.broadcast %176 : f32 to vector<8x128xf32>
    %178 = arith.mulf %1, %177 : vector<8x128xf32>
    %c132 = arith.constant 132 : index
    %179 = memref.load %arg1[%c132] : memref<296xf32, #tpu.memory_space<smem>>
    %180 = vector.broadcast %179 : f32 to vector<8x128xf32>
    %181 = arith.addf %178, %180 : vector<8x128xf32>
    %c36 = arith.constant 36 : index
    %182 = memref.load %arg1[%c36] : memref<296xf32, #tpu.memory_space<smem>>
    %183 = vector.broadcast %182 : f32 to vector<8x128xf32>
    %184 = arith.mulf %3, %183 : vector<8x128xf32>
    %185 = arith.addf %181, %184 : vector<8x128xf32>
    %c68 = arith.constant 68 : index
    %186 = memref.load %arg1[%c68] : memref<296xf32, #tpu.memory_space<smem>>
    %187 = vector.broadcast %186 : f32 to vector<8x128xf32>
    %188 = arith.mulf %5, %187 : vector<8x128xf32>
    %189 = arith.addf %185, %188 : vector<8x128xf32>
    %c100 = arith.constant 100 : index
    %190 = memref.load %arg1[%c100] : memref<296xf32, #tpu.memory_space<smem>>
    %191 = vector.broadcast %190 : f32 to vector<8x128xf32>
    %192 = arith.mulf %7, %191 : vector<8x128xf32>
    %193 = arith.addf %189, %192 : vector<8x128xf32>
    %194 = math.tanh %193 : vector<8x128xf32>
    %c176 = arith.constant 176 : index
    %195 = memref.load %arg1[%c176] : memref<296xf32, #tpu.memory_space<smem>>
    %196 = vector.broadcast %195 : f32 to vector<8x128xf32>
    %197 = arith.mulf %194, %196 : vector<8x128xf32>
    %198 = arith.addf %128, %197 : vector<8x128xf32>
    %c177 = arith.constant 177 : index
    %199 = memref.load %arg1[%c177] : memref<296xf32, #tpu.memory_space<smem>>
    %200 = vector.broadcast %199 : f32 to vector<8x128xf32>
    %201 = arith.mulf %194, %200 : vector<8x128xf32>
    %202 = arith.addf %132, %201 : vector<8x128xf32>
    %c178 = arith.constant 178 : index
    %203 = memref.load %arg1[%c178] : memref<296xf32, #tpu.memory_space<smem>>
    %204 = vector.broadcast %203 : f32 to vector<8x128xf32>
    %205 = arith.mulf %194, %204 : vector<8x128xf32>
    %206 = arith.addf %136, %205 : vector<8x128xf32>
    %c179 = arith.constant 179 : index
    %207 = memref.load %arg1[%c179] : memref<296xf32, #tpu.memory_space<smem>>
    %208 = vector.broadcast %207 : f32 to vector<8x128xf32>
    %209 = arith.mulf %194, %208 : vector<8x128xf32>
    %210 = arith.addf %140, %209 : vector<8x128xf32>
    %c5 = arith.constant 5 : index
    %211 = memref.load %arg1[%c5] : memref<296xf32, #tpu.memory_space<smem>>
    %212 = vector.broadcast %211 : f32 to vector<8x128xf32>
    %213 = arith.mulf %1, %212 : vector<8x128xf32>
    %c133 = arith.constant 133 : index
    %214 = memref.load %arg1[%c133] : memref<296xf32, #tpu.memory_space<smem>>
    %215 = vector.broadcast %214 : f32 to vector<8x128xf32>
    %216 = arith.addf %213, %215 : vector<8x128xf32>
    %c37 = arith.constant 37 : index
    %217 = memref.load %arg1[%c37] : memref<296xf32, #tpu.memory_space<smem>>
    %218 = vector.broadcast %217 : f32 to vector<8x128xf32>
    %219 = arith.mulf %3, %218 : vector<8x128xf32>
    %220 = arith.addf %216, %219 : vector<8x128xf32>
    %c69 = arith.constant 69 : index
    %221 = memref.load %arg1[%c69] : memref<296xf32, #tpu.memory_space<smem>>
    %222 = vector.broadcast %221 : f32 to vector<8x128xf32>
    %223 = arith.mulf %5, %222 : vector<8x128xf32>
    %224 = arith.addf %220, %223 : vector<8x128xf32>
    %c101 = arith.constant 101 : index
    %225 = memref.load %arg1[%c101] : memref<296xf32, #tpu.memory_space<smem>>
    %226 = vector.broadcast %225 : f32 to vector<8x128xf32>
    %227 = arith.mulf %7, %226 : vector<8x128xf32>
    %228 = arith.addf %224, %227 : vector<8x128xf32>
    %229 = math.tanh %228 : vector<8x128xf32>
    %c180 = arith.constant 180 : index
    %230 = memref.load %arg1[%c180] : memref<296xf32, #tpu.memory_space<smem>>
    %231 = vector.broadcast %230 : f32 to vector<8x128xf32>
    %232 = arith.mulf %229, %231 : vector<8x128xf32>
    %233 = arith.addf %163, %232 : vector<8x128xf32>
    %c181 = arith.constant 181 : index
    %234 = memref.load %arg1[%c181] : memref<296xf32, #tpu.memory_space<smem>>
    %235 = vector.broadcast %234 : f32 to vector<8x128xf32>
    %236 = arith.mulf %229, %235 : vector<8x128xf32>
    %237 = arith.addf %167, %236 : vector<8x128xf32>
    %c182 = arith.constant 182 : index
    %238 = memref.load %arg1[%c182] : memref<296xf32, #tpu.memory_space<smem>>
    %239 = vector.broadcast %238 : f32 to vector<8x128xf32>
    %240 = arith.mulf %229, %239 : vector<8x128xf32>
    %241 = arith.addf %171, %240 : vector<8x128xf32>
    %c183 = arith.constant 183 : index
    %242 = memref.load %arg1[%c183] : memref<296xf32, #tpu.memory_space<smem>>
    %243 = vector.broadcast %242 : f32 to vector<8x128xf32>
    %244 = arith.mulf %229, %243 : vector<8x128xf32>
    %245 = arith.addf %175, %244 : vector<8x128xf32>
    %c6 = arith.constant 6 : index
    %246 = memref.load %arg1[%c6] : memref<296xf32, #tpu.memory_space<smem>>
    %247 = vector.broadcast %246 : f32 to vector<8x128xf32>
    %248 = arith.mulf %1, %247 : vector<8x128xf32>
    %c134 = arith.constant 134 : index
    %249 = memref.load %arg1[%c134] : memref<296xf32, #tpu.memory_space<smem>>
    %250 = vector.broadcast %249 : f32 to vector<8x128xf32>
    %251 = arith.addf %248, %250 : vector<8x128xf32>
    %c38 = arith.constant 38 : index
    %252 = memref.load %arg1[%c38] : memref<296xf32, #tpu.memory_space<smem>>
    %253 = vector.broadcast %252 : f32 to vector<8x128xf32>
    %254 = arith.mulf %3, %253 : vector<8x128xf32>
    %255 = arith.addf %251, %254 : vector<8x128xf32>
    %c70 = arith.constant 70 : index
    %256 = memref.load %arg1[%c70] : memref<296xf32, #tpu.memory_space<smem>>
    %257 = vector.broadcast %256 : f32 to vector<8x128xf32>
    %258 = arith.mulf %5, %257 : vector<8x128xf32>
    %259 = arith.addf %255, %258 : vector<8x128xf32>
    %c102 = arith.constant 102 : index
    %260 = memref.load %arg1[%c102] : memref<296xf32, #tpu.memory_space<smem>>
    %261 = vector.broadcast %260 : f32 to vector<8x128xf32>
    %262 = arith.mulf %7, %261 : vector<8x128xf32>
    %263 = arith.addf %259, %262 : vector<8x128xf32>
    %264 = math.tanh %263 : vector<8x128xf32>
    %c184 = arith.constant 184 : index
    %265 = memref.load %arg1[%c184] : memref<296xf32, #tpu.memory_space<smem>>
    %266 = vector.broadcast %265 : f32 to vector<8x128xf32>
    %267 = arith.mulf %264, %266 : vector<8x128xf32>
    %268 = arith.addf %198, %267 : vector<8x128xf32>
    %c185 = arith.constant 185 : index
    %269 = memref.load %arg1[%c185] : memref<296xf32, #tpu.memory_space<smem>>
    %270 = vector.broadcast %269 : f32 to vector<8x128xf32>
    %271 = arith.mulf %264, %270 : vector<8x128xf32>
    %272 = arith.addf %202, %271 : vector<8x128xf32>
    %c186 = arith.constant 186 : index
    %273 = memref.load %arg1[%c186] : memref<296xf32, #tpu.memory_space<smem>>
    %274 = vector.broadcast %273 : f32 to vector<8x128xf32>
    %275 = arith.mulf %264, %274 : vector<8x128xf32>
    %276 = arith.addf %206, %275 : vector<8x128xf32>
    %c187 = arith.constant 187 : index
    %277 = memref.load %arg1[%c187] : memref<296xf32, #tpu.memory_space<smem>>
    %278 = vector.broadcast %277 : f32 to vector<8x128xf32>
    %279 = arith.mulf %264, %278 : vector<8x128xf32>
    %280 = arith.addf %210, %279 : vector<8x128xf32>
    %c7 = arith.constant 7 : index
    %281 = memref.load %arg1[%c7] : memref<296xf32, #tpu.memory_space<smem>>
    %282 = vector.broadcast %281 : f32 to vector<8x128xf32>
    %283 = arith.mulf %1, %282 : vector<8x128xf32>
    %c135 = arith.constant 135 : index
    %284 = memref.load %arg1[%c135] : memref<296xf32, #tpu.memory_space<smem>>
    %285 = vector.broadcast %284 : f32 to vector<8x128xf32>
    %286 = arith.addf %283, %285 : vector<8x128xf32>
    %c39 = arith.constant 39 : index
    %287 = memref.load %arg1[%c39] : memref<296xf32, #tpu.memory_space<smem>>
    %288 = vector.broadcast %287 : f32 to vector<8x128xf32>
    %289 = arith.mulf %3, %288 : vector<8x128xf32>
    %290 = arith.addf %286, %289 : vector<8x128xf32>
    %c71 = arith.constant 71 : index
    %291 = memref.load %arg1[%c71] : memref<296xf32, #tpu.memory_space<smem>>
    %292 = vector.broadcast %291 : f32 to vector<8x128xf32>
    %293 = arith.mulf %5, %292 : vector<8x128xf32>
    %294 = arith.addf %290, %293 : vector<8x128xf32>
    %c103 = arith.constant 103 : index
    %295 = memref.load %arg1[%c103] : memref<296xf32, #tpu.memory_space<smem>>
    %296 = vector.broadcast %295 : f32 to vector<8x128xf32>
    %297 = arith.mulf %7, %296 : vector<8x128xf32>
    %298 = arith.addf %294, %297 : vector<8x128xf32>
    %299 = math.tanh %298 : vector<8x128xf32>
    %c188 = arith.constant 188 : index
    %300 = memref.load %arg1[%c188] : memref<296xf32, #tpu.memory_space<smem>>
    %301 = vector.broadcast %300 : f32 to vector<8x128xf32>
    %302 = arith.mulf %299, %301 : vector<8x128xf32>
    %303 = arith.addf %233, %302 : vector<8x128xf32>
    %c189 = arith.constant 189 : index
    %304 = memref.load %arg1[%c189] : memref<296xf32, #tpu.memory_space<smem>>
    %305 = vector.broadcast %304 : f32 to vector<8x128xf32>
    %306 = arith.mulf %299, %305 : vector<8x128xf32>
    %307 = arith.addf %237, %306 : vector<8x128xf32>
    %c190 = arith.constant 190 : index
    %308 = memref.load %arg1[%c190] : memref<296xf32, #tpu.memory_space<smem>>
    %309 = vector.broadcast %308 : f32 to vector<8x128xf32>
    %310 = arith.mulf %299, %309 : vector<8x128xf32>
    %311 = arith.addf %241, %310 : vector<8x128xf32>
    %c191 = arith.constant 191 : index
    %312 = memref.load %arg1[%c191] : memref<296xf32, #tpu.memory_space<smem>>
    %313 = vector.broadcast %312 : f32 to vector<8x128xf32>
    %314 = arith.mulf %299, %313 : vector<8x128xf32>
    %315 = arith.addf %245, %314 : vector<8x128xf32>
    %c8 = arith.constant 8 : index
    %316 = memref.load %arg1[%c8] : memref<296xf32, #tpu.memory_space<smem>>
    %317 = vector.broadcast %316 : f32 to vector<8x128xf32>
    %318 = arith.mulf %1, %317 : vector<8x128xf32>
    %c136 = arith.constant 136 : index
    %319 = memref.load %arg1[%c136] : memref<296xf32, #tpu.memory_space<smem>>
    %320 = vector.broadcast %319 : f32 to vector<8x128xf32>
    %321 = arith.addf %318, %320 : vector<8x128xf32>
    %c40 = arith.constant 40 : index
    %322 = memref.load %arg1[%c40] : memref<296xf32, #tpu.memory_space<smem>>
    %323 = vector.broadcast %322 : f32 to vector<8x128xf32>
    %324 = arith.mulf %3, %323 : vector<8x128xf32>
    %325 = arith.addf %321, %324 : vector<8x128xf32>
    %c72 = arith.constant 72 : index
    %326 = memref.load %arg1[%c72] : memref<296xf32, #tpu.memory_space<smem>>
    %327 = vector.broadcast %326 : f32 to vector<8x128xf32>
    %328 = arith.mulf %5, %327 : vector<8x128xf32>
    %329 = arith.addf %325, %328 : vector<8x128xf32>
    %c104 = arith.constant 104 : index
    %330 = memref.load %arg1[%c104] : memref<296xf32, #tpu.memory_space<smem>>
    %331 = vector.broadcast %330 : f32 to vector<8x128xf32>
    %332 = arith.mulf %7, %331 : vector<8x128xf32>
    %333 = arith.addf %329, %332 : vector<8x128xf32>
    %334 = math.tanh %333 : vector<8x128xf32>
    %c192 = arith.constant 192 : index
    %335 = memref.load %arg1[%c192] : memref<296xf32, #tpu.memory_space<smem>>
    %336 = vector.broadcast %335 : f32 to vector<8x128xf32>
    %337 = arith.mulf %334, %336 : vector<8x128xf32>
    %338 = arith.addf %268, %337 : vector<8x128xf32>
    %c193 = arith.constant 193 : index
    %339 = memref.load %arg1[%c193] : memref<296xf32, #tpu.memory_space<smem>>
    %340 = vector.broadcast %339 : f32 to vector<8x128xf32>
    %341 = arith.mulf %334, %340 : vector<8x128xf32>
    %342 = arith.addf %272, %341 : vector<8x128xf32>
    %c194 = arith.constant 194 : index
    %343 = memref.load %arg1[%c194] : memref<296xf32, #tpu.memory_space<smem>>
    %344 = vector.broadcast %343 : f32 to vector<8x128xf32>
    %345 = arith.mulf %334, %344 : vector<8x128xf32>
    %346 = arith.addf %276, %345 : vector<8x128xf32>
    %c195 = arith.constant 195 : index
    %347 = memref.load %arg1[%c195] : memref<296xf32, #tpu.memory_space<smem>>
    %348 = vector.broadcast %347 : f32 to vector<8x128xf32>
    %349 = arith.mulf %334, %348 : vector<8x128xf32>
    %350 = arith.addf %280, %349 : vector<8x128xf32>
    %c9 = arith.constant 9 : index
    %351 = memref.load %arg1[%c9] : memref<296xf32, #tpu.memory_space<smem>>
    %352 = vector.broadcast %351 : f32 to vector<8x128xf32>
    %353 = arith.mulf %1, %352 : vector<8x128xf32>
    %c137 = arith.constant 137 : index
    %354 = memref.load %arg1[%c137] : memref<296xf32, #tpu.memory_space<smem>>
    %355 = vector.broadcast %354 : f32 to vector<8x128xf32>
    %356 = arith.addf %353, %355 : vector<8x128xf32>
    %c41 = arith.constant 41 : index
    %357 = memref.load %arg1[%c41] : memref<296xf32, #tpu.memory_space<smem>>
    %358 = vector.broadcast %357 : f32 to vector<8x128xf32>
    %359 = arith.mulf %3, %358 : vector<8x128xf32>
    %360 = arith.addf %356, %359 : vector<8x128xf32>
    %c73 = arith.constant 73 : index
    %361 = memref.load %arg1[%c73] : memref<296xf32, #tpu.memory_space<smem>>
    %362 = vector.broadcast %361 : f32 to vector<8x128xf32>
    %363 = arith.mulf %5, %362 : vector<8x128xf32>
    %364 = arith.addf %360, %363 : vector<8x128xf32>
    %c105 = arith.constant 105 : index
    %365 = memref.load %arg1[%c105] : memref<296xf32, #tpu.memory_space<smem>>
    %366 = vector.broadcast %365 : f32 to vector<8x128xf32>
    %367 = arith.mulf %7, %366 : vector<8x128xf32>
    %368 = arith.addf %364, %367 : vector<8x128xf32>
    %369 = math.tanh %368 : vector<8x128xf32>
    %c196 = arith.constant 196 : index
    %370 = memref.load %arg1[%c196] : memref<296xf32, #tpu.memory_space<smem>>
    %371 = vector.broadcast %370 : f32 to vector<8x128xf32>
    %372 = arith.mulf %369, %371 : vector<8x128xf32>
    %373 = arith.addf %303, %372 : vector<8x128xf32>
    %c197 = arith.constant 197 : index
    %374 = memref.load %arg1[%c197] : memref<296xf32, #tpu.memory_space<smem>>
    %375 = vector.broadcast %374 : f32 to vector<8x128xf32>
    %376 = arith.mulf %369, %375 : vector<8x128xf32>
    %377 = arith.addf %307, %376 : vector<8x128xf32>
    %c198 = arith.constant 198 : index
    %378 = memref.load %arg1[%c198] : memref<296xf32, #tpu.memory_space<smem>>
    %379 = vector.broadcast %378 : f32 to vector<8x128xf32>
    %380 = arith.mulf %369, %379 : vector<8x128xf32>
    %381 = arith.addf %311, %380 : vector<8x128xf32>
    %c199 = arith.constant 199 : index
    %382 = memref.load %arg1[%c199] : memref<296xf32, #tpu.memory_space<smem>>
    %383 = vector.broadcast %382 : f32 to vector<8x128xf32>
    %384 = arith.mulf %369, %383 : vector<8x128xf32>
    %385 = arith.addf %315, %384 : vector<8x128xf32>
    %c10 = arith.constant 10 : index
    %386 = memref.load %arg1[%c10] : memref<296xf32, #tpu.memory_space<smem>>
    %387 = vector.broadcast %386 : f32 to vector<8x128xf32>
    %388 = arith.mulf %1, %387 : vector<8x128xf32>
    %c138 = arith.constant 138 : index
    %389 = memref.load %arg1[%c138] : memref<296xf32, #tpu.memory_space<smem>>
    %390 = vector.broadcast %389 : f32 to vector<8x128xf32>
    %391 = arith.addf %388, %390 : vector<8x128xf32>
    %c42 = arith.constant 42 : index
    %392 = memref.load %arg1[%c42] : memref<296xf32, #tpu.memory_space<smem>>
    %393 = vector.broadcast %392 : f32 to vector<8x128xf32>
    %394 = arith.mulf %3, %393 : vector<8x128xf32>
    %395 = arith.addf %391, %394 : vector<8x128xf32>
    %c74 = arith.constant 74 : index
    %396 = memref.load %arg1[%c74] : memref<296xf32, #tpu.memory_space<smem>>
    %397 = vector.broadcast %396 : f32 to vector<8x128xf32>
    %398 = arith.mulf %5, %397 : vector<8x128xf32>
    %399 = arith.addf %395, %398 : vector<8x128xf32>
    %c106 = arith.constant 106 : index
    %400 = memref.load %arg1[%c106] : memref<296xf32, #tpu.memory_space<smem>>
    %401 = vector.broadcast %400 : f32 to vector<8x128xf32>
    %402 = arith.mulf %7, %401 : vector<8x128xf32>
    %403 = arith.addf %399, %402 : vector<8x128xf32>
    %404 = math.tanh %403 : vector<8x128xf32>
    %c200 = arith.constant 200 : index
    %405 = memref.load %arg1[%c200] : memref<296xf32, #tpu.memory_space<smem>>
    %406 = vector.broadcast %405 : f32 to vector<8x128xf32>
    %407 = arith.mulf %404, %406 : vector<8x128xf32>
    %408 = arith.addf %338, %407 : vector<8x128xf32>
    %c201 = arith.constant 201 : index
    %409 = memref.load %arg1[%c201] : memref<296xf32, #tpu.memory_space<smem>>
    %410 = vector.broadcast %409 : f32 to vector<8x128xf32>
    %411 = arith.mulf %404, %410 : vector<8x128xf32>
    %412 = arith.addf %342, %411 : vector<8x128xf32>
    %c202 = arith.constant 202 : index
    %413 = memref.load %arg1[%c202] : memref<296xf32, #tpu.memory_space<smem>>
    %414 = vector.broadcast %413 : f32 to vector<8x128xf32>
    %415 = arith.mulf %404, %414 : vector<8x128xf32>
    %416 = arith.addf %346, %415 : vector<8x128xf32>
    %c203 = arith.constant 203 : index
    %417 = memref.load %arg1[%c203] : memref<296xf32, #tpu.memory_space<smem>>
    %418 = vector.broadcast %417 : f32 to vector<8x128xf32>
    %419 = arith.mulf %404, %418 : vector<8x128xf32>
    %420 = arith.addf %350, %419 : vector<8x128xf32>
    %c11 = arith.constant 11 : index
    %421 = memref.load %arg1[%c11] : memref<296xf32, #tpu.memory_space<smem>>
    %422 = vector.broadcast %421 : f32 to vector<8x128xf32>
    %423 = arith.mulf %1, %422 : vector<8x128xf32>
    %c139 = arith.constant 139 : index
    %424 = memref.load %arg1[%c139] : memref<296xf32, #tpu.memory_space<smem>>
    %425 = vector.broadcast %424 : f32 to vector<8x128xf32>
    %426 = arith.addf %423, %425 : vector<8x128xf32>
    %c43 = arith.constant 43 : index
    %427 = memref.load %arg1[%c43] : memref<296xf32, #tpu.memory_space<smem>>
    %428 = vector.broadcast %427 : f32 to vector<8x128xf32>
    %429 = arith.mulf %3, %428 : vector<8x128xf32>
    %430 = arith.addf %426, %429 : vector<8x128xf32>
    %c75 = arith.constant 75 : index
    %431 = memref.load %arg1[%c75] : memref<296xf32, #tpu.memory_space<smem>>
    %432 = vector.broadcast %431 : f32 to vector<8x128xf32>
    %433 = arith.mulf %5, %432 : vector<8x128xf32>
    %434 = arith.addf %430, %433 : vector<8x128xf32>
    %c107 = arith.constant 107 : index
    %435 = memref.load %arg1[%c107] : memref<296xf32, #tpu.memory_space<smem>>
    %436 = vector.broadcast %435 : f32 to vector<8x128xf32>
    %437 = arith.mulf %7, %436 : vector<8x128xf32>
    %438 = arith.addf %434, %437 : vector<8x128xf32>
    %439 = math.tanh %438 : vector<8x128xf32>
    %c204 = arith.constant 204 : index
    %440 = memref.load %arg1[%c204] : memref<296xf32, #tpu.memory_space<smem>>
    %441 = vector.broadcast %440 : f32 to vector<8x128xf32>
    %442 = arith.mulf %439, %441 : vector<8x128xf32>
    %443 = arith.addf %373, %442 : vector<8x128xf32>
    %c205 = arith.constant 205 : index
    %444 = memref.load %arg1[%c205] : memref<296xf32, #tpu.memory_space<smem>>
    %445 = vector.broadcast %444 : f32 to vector<8x128xf32>
    %446 = arith.mulf %439, %445 : vector<8x128xf32>
    %447 = arith.addf %377, %446 : vector<8x128xf32>
    %c206 = arith.constant 206 : index
    %448 = memref.load %arg1[%c206] : memref<296xf32, #tpu.memory_space<smem>>
    %449 = vector.broadcast %448 : f32 to vector<8x128xf32>
    %450 = arith.mulf %439, %449 : vector<8x128xf32>
    %451 = arith.addf %381, %450 : vector<8x128xf32>
    %c207 = arith.constant 207 : index
    %452 = memref.load %arg1[%c207] : memref<296xf32, #tpu.memory_space<smem>>
    %453 = vector.broadcast %452 : f32 to vector<8x128xf32>
    %454 = arith.mulf %439, %453 : vector<8x128xf32>
    %455 = arith.addf %385, %454 : vector<8x128xf32>
    %c12 = arith.constant 12 : index
    %456 = memref.load %arg1[%c12] : memref<296xf32, #tpu.memory_space<smem>>
    %457 = vector.broadcast %456 : f32 to vector<8x128xf32>
    %458 = arith.mulf %1, %457 : vector<8x128xf32>
    %c140 = arith.constant 140 : index
    %459 = memref.load %arg1[%c140] : memref<296xf32, #tpu.memory_space<smem>>
    %460 = vector.broadcast %459 : f32 to vector<8x128xf32>
    %461 = arith.addf %458, %460 : vector<8x128xf32>
    %c44 = arith.constant 44 : index
    %462 = memref.load %arg1[%c44] : memref<296xf32, #tpu.memory_space<smem>>
    %463 = vector.broadcast %462 : f32 to vector<8x128xf32>
    %464 = arith.mulf %3, %463 : vector<8x128xf32>
    %465 = arith.addf %461, %464 : vector<8x128xf32>
    %c76 = arith.constant 76 : index
    %466 = memref.load %arg1[%c76] : memref<296xf32, #tpu.memory_space<smem>>
    %467 = vector.broadcast %466 : f32 to vector<8x128xf32>
    %468 = arith.mulf %5, %467 : vector<8x128xf32>
    %469 = arith.addf %465, %468 : vector<8x128xf32>
    %c108 = arith.constant 108 : index
    %470 = memref.load %arg1[%c108] : memref<296xf32, #tpu.memory_space<smem>>
    %471 = vector.broadcast %470 : f32 to vector<8x128xf32>
    %472 = arith.mulf %7, %471 : vector<8x128xf32>
    %473 = arith.addf %469, %472 : vector<8x128xf32>
    %474 = math.tanh %473 : vector<8x128xf32>
    %c208 = arith.constant 208 : index
    %475 = memref.load %arg1[%c208] : memref<296xf32, #tpu.memory_space<smem>>
    %476 = vector.broadcast %475 : f32 to vector<8x128xf32>
    %477 = arith.mulf %474, %476 : vector<8x128xf32>
    %478 = arith.addf %408, %477 : vector<8x128xf32>
    %c209 = arith.constant 209 : index
    %479 = memref.load %arg1[%c209] : memref<296xf32, #tpu.memory_space<smem>>
    %480 = vector.broadcast %479 : f32 to vector<8x128xf32>
    %481 = arith.mulf %474, %480 : vector<8x128xf32>
    %482 = arith.addf %412, %481 : vector<8x128xf32>
    %c210 = arith.constant 210 : index
    %483 = memref.load %arg1[%c210] : memref<296xf32, #tpu.memory_space<smem>>
    %484 = vector.broadcast %483 : f32 to vector<8x128xf32>
    %485 = arith.mulf %474, %484 : vector<8x128xf32>
    %486 = arith.addf %416, %485 : vector<8x128xf32>
    %c211 = arith.constant 211 : index
    %487 = memref.load %arg1[%c211] : memref<296xf32, #tpu.memory_space<smem>>
    %488 = vector.broadcast %487 : f32 to vector<8x128xf32>
    %489 = arith.mulf %474, %488 : vector<8x128xf32>
    %490 = arith.addf %420, %489 : vector<8x128xf32>
    %c13 = arith.constant 13 : index
    %491 = memref.load %arg1[%c13] : memref<296xf32, #tpu.memory_space<smem>>
    %492 = vector.broadcast %491 : f32 to vector<8x128xf32>
    %493 = arith.mulf %1, %492 : vector<8x128xf32>
    %c141 = arith.constant 141 : index
    %494 = memref.load %arg1[%c141] : memref<296xf32, #tpu.memory_space<smem>>
    %495 = vector.broadcast %494 : f32 to vector<8x128xf32>
    %496 = arith.addf %493, %495 : vector<8x128xf32>
    %c45 = arith.constant 45 : index
    %497 = memref.load %arg1[%c45] : memref<296xf32, #tpu.memory_space<smem>>
    %498 = vector.broadcast %497 : f32 to vector<8x128xf32>
    %499 = arith.mulf %3, %498 : vector<8x128xf32>
    %500 = arith.addf %496, %499 : vector<8x128xf32>
    %c77 = arith.constant 77 : index
    %501 = memref.load %arg1[%c77] : memref<296xf32, #tpu.memory_space<smem>>
    %502 = vector.broadcast %501 : f32 to vector<8x128xf32>
    %503 = arith.mulf %5, %502 : vector<8x128xf32>
    %504 = arith.addf %500, %503 : vector<8x128xf32>
    %c109 = arith.constant 109 : index
    %505 = memref.load %arg1[%c109] : memref<296xf32, #tpu.memory_space<smem>>
    %506 = vector.broadcast %505 : f32 to vector<8x128xf32>
    %507 = arith.mulf %7, %506 : vector<8x128xf32>
    %508 = arith.addf %504, %507 : vector<8x128xf32>
    %509 = math.tanh %508 : vector<8x128xf32>
    %c212 = arith.constant 212 : index
    %510 = memref.load %arg1[%c212] : memref<296xf32, #tpu.memory_space<smem>>
    %511 = vector.broadcast %510 : f32 to vector<8x128xf32>
    %512 = arith.mulf %509, %511 : vector<8x128xf32>
    %513 = arith.addf %443, %512 : vector<8x128xf32>
    %c213 = arith.constant 213 : index
    %514 = memref.load %arg1[%c213] : memref<296xf32, #tpu.memory_space<smem>>
    %515 = vector.broadcast %514 : f32 to vector<8x128xf32>
    %516 = arith.mulf %509, %515 : vector<8x128xf32>
    %517 = arith.addf %447, %516 : vector<8x128xf32>
    %c214 = arith.constant 214 : index
    %518 = memref.load %arg1[%c214] : memref<296xf32, #tpu.memory_space<smem>>
    %519 = vector.broadcast %518 : f32 to vector<8x128xf32>
    %520 = arith.mulf %509, %519 : vector<8x128xf32>
    %521 = arith.addf %451, %520 : vector<8x128xf32>
    %c215 = arith.constant 215 : index
    %522 = memref.load %arg1[%c215] : memref<296xf32, #tpu.memory_space<smem>>
    %523 = vector.broadcast %522 : f32 to vector<8x128xf32>
    %524 = arith.mulf %509, %523 : vector<8x128xf32>
    %525 = arith.addf %455, %524 : vector<8x128xf32>
    %c14 = arith.constant 14 : index
    %526 = memref.load %arg1[%c14] : memref<296xf32, #tpu.memory_space<smem>>
    %527 = vector.broadcast %526 : f32 to vector<8x128xf32>
    %528 = arith.mulf %1, %527 : vector<8x128xf32>
    %c142 = arith.constant 142 : index
    %529 = memref.load %arg1[%c142] : memref<296xf32, #tpu.memory_space<smem>>
    %530 = vector.broadcast %529 : f32 to vector<8x128xf32>
    %531 = arith.addf %528, %530 : vector<8x128xf32>
    %c46 = arith.constant 46 : index
    %532 = memref.load %arg1[%c46] : memref<296xf32, #tpu.memory_space<smem>>
    %533 = vector.broadcast %532 : f32 to vector<8x128xf32>
    %534 = arith.mulf %3, %533 : vector<8x128xf32>
    %535 = arith.addf %531, %534 : vector<8x128xf32>
    %c78 = arith.constant 78 : index
    %536 = memref.load %arg1[%c78] : memref<296xf32, #tpu.memory_space<smem>>
    %537 = vector.broadcast %536 : f32 to vector<8x128xf32>
    %538 = arith.mulf %5, %537 : vector<8x128xf32>
    %539 = arith.addf %535, %538 : vector<8x128xf32>
    %c110 = arith.constant 110 : index
    %540 = memref.load %arg1[%c110] : memref<296xf32, #tpu.memory_space<smem>>
    %541 = vector.broadcast %540 : f32 to vector<8x128xf32>
    %542 = arith.mulf %7, %541 : vector<8x128xf32>
    %543 = arith.addf %539, %542 : vector<8x128xf32>
    %544 = math.tanh %543 : vector<8x128xf32>
    %c216 = arith.constant 216 : index
    %545 = memref.load %arg1[%c216] : memref<296xf32, #tpu.memory_space<smem>>
    %546 = vector.broadcast %545 : f32 to vector<8x128xf32>
    %547 = arith.mulf %544, %546 : vector<8x128xf32>
    %548 = arith.addf %478, %547 : vector<8x128xf32>
    %c217 = arith.constant 217 : index
    %549 = memref.load %arg1[%c217] : memref<296xf32, #tpu.memory_space<smem>>
    %550 = vector.broadcast %549 : f32 to vector<8x128xf32>
    %551 = arith.mulf %544, %550 : vector<8x128xf32>
    %552 = arith.addf %482, %551 : vector<8x128xf32>
    %c218 = arith.constant 218 : index
    %553 = memref.load %arg1[%c218] : memref<296xf32, #tpu.memory_space<smem>>
    %554 = vector.broadcast %553 : f32 to vector<8x128xf32>
    %555 = arith.mulf %544, %554 : vector<8x128xf32>
    %556 = arith.addf %486, %555 : vector<8x128xf32>
    %c219 = arith.constant 219 : index
    %557 = memref.load %arg1[%c219] : memref<296xf32, #tpu.memory_space<smem>>
    %558 = vector.broadcast %557 : f32 to vector<8x128xf32>
    %559 = arith.mulf %544, %558 : vector<8x128xf32>
    %560 = arith.addf %490, %559 : vector<8x128xf32>
    %c15 = arith.constant 15 : index
    %561 = memref.load %arg1[%c15] : memref<296xf32, #tpu.memory_space<smem>>
    %562 = vector.broadcast %561 : f32 to vector<8x128xf32>
    %563 = arith.mulf %1, %562 : vector<8x128xf32>
    %c143 = arith.constant 143 : index
    %564 = memref.load %arg1[%c143] : memref<296xf32, #tpu.memory_space<smem>>
    %565 = vector.broadcast %564 : f32 to vector<8x128xf32>
    %566 = arith.addf %563, %565 : vector<8x128xf32>
    %c47 = arith.constant 47 : index
    %567 = memref.load %arg1[%c47] : memref<296xf32, #tpu.memory_space<smem>>
    %568 = vector.broadcast %567 : f32 to vector<8x128xf32>
    %569 = arith.mulf %3, %568 : vector<8x128xf32>
    %570 = arith.addf %566, %569 : vector<8x128xf32>
    %c79 = arith.constant 79 : index
    %571 = memref.load %arg1[%c79] : memref<296xf32, #tpu.memory_space<smem>>
    %572 = vector.broadcast %571 : f32 to vector<8x128xf32>
    %573 = arith.mulf %5, %572 : vector<8x128xf32>
    %574 = arith.addf %570, %573 : vector<8x128xf32>
    %c111 = arith.constant 111 : index
    %575 = memref.load %arg1[%c111] : memref<296xf32, #tpu.memory_space<smem>>
    %576 = vector.broadcast %575 : f32 to vector<8x128xf32>
    %577 = arith.mulf %7, %576 : vector<8x128xf32>
    %578 = arith.addf %574, %577 : vector<8x128xf32>
    %579 = math.tanh %578 : vector<8x128xf32>
    %c220 = arith.constant 220 : index
    %580 = memref.load %arg1[%c220] : memref<296xf32, #tpu.memory_space<smem>>
    %581 = vector.broadcast %580 : f32 to vector<8x128xf32>
    %582 = arith.mulf %579, %581 : vector<8x128xf32>
    %583 = arith.addf %513, %582 : vector<8x128xf32>
    %c221 = arith.constant 221 : index
    %584 = memref.load %arg1[%c221] : memref<296xf32, #tpu.memory_space<smem>>
    %585 = vector.broadcast %584 : f32 to vector<8x128xf32>
    %586 = arith.mulf %579, %585 : vector<8x128xf32>
    %587 = arith.addf %517, %586 : vector<8x128xf32>
    %c222 = arith.constant 222 : index
    %588 = memref.load %arg1[%c222] : memref<296xf32, #tpu.memory_space<smem>>
    %589 = vector.broadcast %588 : f32 to vector<8x128xf32>
    %590 = arith.mulf %579, %589 : vector<8x128xf32>
    %591 = arith.addf %521, %590 : vector<8x128xf32>
    %c223 = arith.constant 223 : index
    %592 = memref.load %arg1[%c223] : memref<296xf32, #tpu.memory_space<smem>>
    %593 = vector.broadcast %592 : f32 to vector<8x128xf32>
    %594 = arith.mulf %579, %593 : vector<8x128xf32>
    %595 = arith.addf %525, %594 : vector<8x128xf32>
    %c16 = arith.constant 16 : index
    %596 = memref.load %arg1[%c16] : memref<296xf32, #tpu.memory_space<smem>>
    %597 = vector.broadcast %596 : f32 to vector<8x128xf32>
    %598 = arith.mulf %1, %597 : vector<8x128xf32>
    %c144 = arith.constant 144 : index
    %599 = memref.load %arg1[%c144] : memref<296xf32, #tpu.memory_space<smem>>
    %600 = vector.broadcast %599 : f32 to vector<8x128xf32>
    %601 = arith.addf %598, %600 : vector<8x128xf32>
    %c48 = arith.constant 48 : index
    %602 = memref.load %arg1[%c48] : memref<296xf32, #tpu.memory_space<smem>>
    %603 = vector.broadcast %602 : f32 to vector<8x128xf32>
    %604 = arith.mulf %3, %603 : vector<8x128xf32>
    %605 = arith.addf %601, %604 : vector<8x128xf32>
    %c80 = arith.constant 80 : index
    %606 = memref.load %arg1[%c80] : memref<296xf32, #tpu.memory_space<smem>>
    %607 = vector.broadcast %606 : f32 to vector<8x128xf32>
    %608 = arith.mulf %5, %607 : vector<8x128xf32>
    %609 = arith.addf %605, %608 : vector<8x128xf32>
    %c112 = arith.constant 112 : index
    %610 = memref.load %arg1[%c112] : memref<296xf32, #tpu.memory_space<smem>>
    %611 = vector.broadcast %610 : f32 to vector<8x128xf32>
    %612 = arith.mulf %7, %611 : vector<8x128xf32>
    %613 = arith.addf %609, %612 : vector<8x128xf32>
    %614 = math.tanh %613 : vector<8x128xf32>
    %c224 = arith.constant 224 : index
    %615 = memref.load %arg1[%c224] : memref<296xf32, #tpu.memory_space<smem>>
    %616 = vector.broadcast %615 : f32 to vector<8x128xf32>
    %617 = arith.mulf %614, %616 : vector<8x128xf32>
    %618 = arith.addf %548, %617 : vector<8x128xf32>
    %c225 = arith.constant 225 : index
    %619 = memref.load %arg1[%c225] : memref<296xf32, #tpu.memory_space<smem>>
    %620 = vector.broadcast %619 : f32 to vector<8x128xf32>
    %621 = arith.mulf %614, %620 : vector<8x128xf32>
    %622 = arith.addf %552, %621 : vector<8x128xf32>
    %c226 = arith.constant 226 : index
    %623 = memref.load %arg1[%c226] : memref<296xf32, #tpu.memory_space<smem>>
    %624 = vector.broadcast %623 : f32 to vector<8x128xf32>
    %625 = arith.mulf %614, %624 : vector<8x128xf32>
    %626 = arith.addf %556, %625 : vector<8x128xf32>
    %c227 = arith.constant 227 : index
    %627 = memref.load %arg1[%c227] : memref<296xf32, #tpu.memory_space<smem>>
    %628 = vector.broadcast %627 : f32 to vector<8x128xf32>
    %629 = arith.mulf %614, %628 : vector<8x128xf32>
    %630 = arith.addf %560, %629 : vector<8x128xf32>
    %c17 = arith.constant 17 : index
    %631 = memref.load %arg1[%c17] : memref<296xf32, #tpu.memory_space<smem>>
    %632 = vector.broadcast %631 : f32 to vector<8x128xf32>
    %633 = arith.mulf %1, %632 : vector<8x128xf32>
    %c145 = arith.constant 145 : index
    %634 = memref.load %arg1[%c145] : memref<296xf32, #tpu.memory_space<smem>>
    %635 = vector.broadcast %634 : f32 to vector<8x128xf32>
    %636 = arith.addf %633, %635 : vector<8x128xf32>
    %c49 = arith.constant 49 : index
    %637 = memref.load %arg1[%c49] : memref<296xf32, #tpu.memory_space<smem>>
    %638 = vector.broadcast %637 : f32 to vector<8x128xf32>
    %639 = arith.mulf %3, %638 : vector<8x128xf32>
    %640 = arith.addf %636, %639 : vector<8x128xf32>
    %c81 = arith.constant 81 : index
    %641 = memref.load %arg1[%c81] : memref<296xf32, #tpu.memory_space<smem>>
    %642 = vector.broadcast %641 : f32 to vector<8x128xf32>
    %643 = arith.mulf %5, %642 : vector<8x128xf32>
    %644 = arith.addf %640, %643 : vector<8x128xf32>
    %c113 = arith.constant 113 : index
    %645 = memref.load %arg1[%c113] : memref<296xf32, #tpu.memory_space<smem>>
    %646 = vector.broadcast %645 : f32 to vector<8x128xf32>
    %647 = arith.mulf %7, %646 : vector<8x128xf32>
    %648 = arith.addf %644, %647 : vector<8x128xf32>
    %649 = math.tanh %648 : vector<8x128xf32>
    %c228 = arith.constant 228 : index
    %650 = memref.load %arg1[%c228] : memref<296xf32, #tpu.memory_space<smem>>
    %651 = vector.broadcast %650 : f32 to vector<8x128xf32>
    %652 = arith.mulf %649, %651 : vector<8x128xf32>
    %653 = arith.addf %583, %652 : vector<8x128xf32>
    %c229 = arith.constant 229 : index
    %654 = memref.load %arg1[%c229] : memref<296xf32, #tpu.memory_space<smem>>
    %655 = vector.broadcast %654 : f32 to vector<8x128xf32>
    %656 = arith.mulf %649, %655 : vector<8x128xf32>
    %657 = arith.addf %587, %656 : vector<8x128xf32>
    %c230 = arith.constant 230 : index
    %658 = memref.load %arg1[%c230] : memref<296xf32, #tpu.memory_space<smem>>
    %659 = vector.broadcast %658 : f32 to vector<8x128xf32>
    %660 = arith.mulf %649, %659 : vector<8x128xf32>
    %661 = arith.addf %591, %660 : vector<8x128xf32>
    %c231 = arith.constant 231 : index
    %662 = memref.load %arg1[%c231] : memref<296xf32, #tpu.memory_space<smem>>
    %663 = vector.broadcast %662 : f32 to vector<8x128xf32>
    %664 = arith.mulf %649, %663 : vector<8x128xf32>
    %665 = arith.addf %595, %664 : vector<8x128xf32>
    %c18 = arith.constant 18 : index
    %666 = memref.load %arg1[%c18] : memref<296xf32, #tpu.memory_space<smem>>
    %667 = vector.broadcast %666 : f32 to vector<8x128xf32>
    %668 = arith.mulf %1, %667 : vector<8x128xf32>
    %c146 = arith.constant 146 : index
    %669 = memref.load %arg1[%c146] : memref<296xf32, #tpu.memory_space<smem>>
    %670 = vector.broadcast %669 : f32 to vector<8x128xf32>
    %671 = arith.addf %668, %670 : vector<8x128xf32>
    %c50 = arith.constant 50 : index
    %672 = memref.load %arg1[%c50] : memref<296xf32, #tpu.memory_space<smem>>
    %673 = vector.broadcast %672 : f32 to vector<8x128xf32>
    %674 = arith.mulf %3, %673 : vector<8x128xf32>
    %675 = arith.addf %671, %674 : vector<8x128xf32>
    %c82 = arith.constant 82 : index
    %676 = memref.load %arg1[%c82] : memref<296xf32, #tpu.memory_space<smem>>
    %677 = vector.broadcast %676 : f32 to vector<8x128xf32>
    %678 = arith.mulf %5, %677 : vector<8x128xf32>
    %679 = arith.addf %675, %678 : vector<8x128xf32>
    %c114 = arith.constant 114 : index
    %680 = memref.load %arg1[%c114] : memref<296xf32, #tpu.memory_space<smem>>
    %681 = vector.broadcast %680 : f32 to vector<8x128xf32>
    %682 = arith.mulf %7, %681 : vector<8x128xf32>
    %683 = arith.addf %679, %682 : vector<8x128xf32>
    %684 = math.tanh %683 : vector<8x128xf32>
    %c232 = arith.constant 232 : index
    %685 = memref.load %arg1[%c232] : memref<296xf32, #tpu.memory_space<smem>>
    %686 = vector.broadcast %685 : f32 to vector<8x128xf32>
    %687 = arith.mulf %684, %686 : vector<8x128xf32>
    %688 = arith.addf %618, %687 : vector<8x128xf32>
    %c233 = arith.constant 233 : index
    %689 = memref.load %arg1[%c233] : memref<296xf32, #tpu.memory_space<smem>>
    %690 = vector.broadcast %689 : f32 to vector<8x128xf32>
    %691 = arith.mulf %684, %690 : vector<8x128xf32>
    %692 = arith.addf %622, %691 : vector<8x128xf32>
    %c234 = arith.constant 234 : index
    %693 = memref.load %arg1[%c234] : memref<296xf32, #tpu.memory_space<smem>>
    %694 = vector.broadcast %693 : f32 to vector<8x128xf32>
    %695 = arith.mulf %684, %694 : vector<8x128xf32>
    %696 = arith.addf %626, %695 : vector<8x128xf32>
    %c235 = arith.constant 235 : index
    %697 = memref.load %arg1[%c235] : memref<296xf32, #tpu.memory_space<smem>>
    %698 = vector.broadcast %697 : f32 to vector<8x128xf32>
    %699 = arith.mulf %684, %698 : vector<8x128xf32>
    %700 = arith.addf %630, %699 : vector<8x128xf32>
    %c19 = arith.constant 19 : index
    %701 = memref.load %arg1[%c19] : memref<296xf32, #tpu.memory_space<smem>>
    %702 = vector.broadcast %701 : f32 to vector<8x128xf32>
    %703 = arith.mulf %1, %702 : vector<8x128xf32>
    %c147 = arith.constant 147 : index
    %704 = memref.load %arg1[%c147] : memref<296xf32, #tpu.memory_space<smem>>
    %705 = vector.broadcast %704 : f32 to vector<8x128xf32>
    %706 = arith.addf %703, %705 : vector<8x128xf32>
    %c51 = arith.constant 51 : index
    %707 = memref.load %arg1[%c51] : memref<296xf32, #tpu.memory_space<smem>>
    %708 = vector.broadcast %707 : f32 to vector<8x128xf32>
    %709 = arith.mulf %3, %708 : vector<8x128xf32>
    %710 = arith.addf %706, %709 : vector<8x128xf32>
    %c83 = arith.constant 83 : index
    %711 = memref.load %arg1[%c83] : memref<296xf32, #tpu.memory_space<smem>>
    %712 = vector.broadcast %711 : f32 to vector<8x128xf32>
    %713 = arith.mulf %5, %712 : vector<8x128xf32>
    %714 = arith.addf %710, %713 : vector<8x128xf32>
    %c115 = arith.constant 115 : index
    %715 = memref.load %arg1[%c115] : memref<296xf32, #tpu.memory_space<smem>>
    %716 = vector.broadcast %715 : f32 to vector<8x128xf32>
    %717 = arith.mulf %7, %716 : vector<8x128xf32>
    %718 = arith.addf %714, %717 : vector<8x128xf32>
    %719 = math.tanh %718 : vector<8x128xf32>
    %c236 = arith.constant 236 : index
    %720 = memref.load %arg1[%c236] : memref<296xf32, #tpu.memory_space<smem>>
    %721 = vector.broadcast %720 : f32 to vector<8x128xf32>
    %722 = arith.mulf %719, %721 : vector<8x128xf32>
    %723 = arith.addf %653, %722 : vector<8x128xf32>
    %c237 = arith.constant 237 : index
    %724 = memref.load %arg1[%c237] : memref<296xf32, #tpu.memory_space<smem>>
    %725 = vector.broadcast %724 : f32 to vector<8x128xf32>
    %726 = arith.mulf %719, %725 : vector<8x128xf32>
    %727 = arith.addf %657, %726 : vector<8x128xf32>
    %c238 = arith.constant 238 : index
    %728 = memref.load %arg1[%c238] : memref<296xf32, #tpu.memory_space<smem>>
    %729 = vector.broadcast %728 : f32 to vector<8x128xf32>
    %730 = arith.mulf %719, %729 : vector<8x128xf32>
    %731 = arith.addf %661, %730 : vector<8x128xf32>
    %c239 = arith.constant 239 : index
    %732 = memref.load %arg1[%c239] : memref<296xf32, #tpu.memory_space<smem>>
    %733 = vector.broadcast %732 : f32 to vector<8x128xf32>
    %734 = arith.mulf %719, %733 : vector<8x128xf32>
    %735 = arith.addf %665, %734 : vector<8x128xf32>
    %c20 = arith.constant 20 : index
    %736 = memref.load %arg1[%c20] : memref<296xf32, #tpu.memory_space<smem>>
    %737 = vector.broadcast %736 : f32 to vector<8x128xf32>
    %738 = arith.mulf %1, %737 : vector<8x128xf32>
    %c148 = arith.constant 148 : index
    %739 = memref.load %arg1[%c148] : memref<296xf32, #tpu.memory_space<smem>>
    %740 = vector.broadcast %739 : f32 to vector<8x128xf32>
    %741 = arith.addf %738, %740 : vector<8x128xf32>
    %c52 = arith.constant 52 : index
    %742 = memref.load %arg1[%c52] : memref<296xf32, #tpu.memory_space<smem>>
    %743 = vector.broadcast %742 : f32 to vector<8x128xf32>
    %744 = arith.mulf %3, %743 : vector<8x128xf32>
    %745 = arith.addf %741, %744 : vector<8x128xf32>
    %c84 = arith.constant 84 : index
    %746 = memref.load %arg1[%c84] : memref<296xf32, #tpu.memory_space<smem>>
    %747 = vector.broadcast %746 : f32 to vector<8x128xf32>
    %748 = arith.mulf %5, %747 : vector<8x128xf32>
    %749 = arith.addf %745, %748 : vector<8x128xf32>
    %c116 = arith.constant 116 : index
    %750 = memref.load %arg1[%c116] : memref<296xf32, #tpu.memory_space<smem>>
    %751 = vector.broadcast %750 : f32 to vector<8x128xf32>
    %752 = arith.mulf %7, %751 : vector<8x128xf32>
    %753 = arith.addf %749, %752 : vector<8x128xf32>
    %754 = math.tanh %753 : vector<8x128xf32>
    %c240 = arith.constant 240 : index
    %755 = memref.load %arg1[%c240] : memref<296xf32, #tpu.memory_space<smem>>
    %756 = vector.broadcast %755 : f32 to vector<8x128xf32>
    %757 = arith.mulf %754, %756 : vector<8x128xf32>
    %758 = arith.addf %688, %757 : vector<8x128xf32>
    %c241 = arith.constant 241 : index
    %759 = memref.load %arg1[%c241] : memref<296xf32, #tpu.memory_space<smem>>
    %760 = vector.broadcast %759 : f32 to vector<8x128xf32>
    %761 = arith.mulf %754, %760 : vector<8x128xf32>
    %762 = arith.addf %692, %761 : vector<8x128xf32>
    %c242 = arith.constant 242 : index
    %763 = memref.load %arg1[%c242] : memref<296xf32, #tpu.memory_space<smem>>
    %764 = vector.broadcast %763 : f32 to vector<8x128xf32>
    %765 = arith.mulf %754, %764 : vector<8x128xf32>
    %766 = arith.addf %696, %765 : vector<8x128xf32>
    %c243 = arith.constant 243 : index
    %767 = memref.load %arg1[%c243] : memref<296xf32, #tpu.memory_space<smem>>
    %768 = vector.broadcast %767 : f32 to vector<8x128xf32>
    %769 = arith.mulf %754, %768 : vector<8x128xf32>
    %770 = arith.addf %700, %769 : vector<8x128xf32>
    %c21 = arith.constant 21 : index
    %771 = memref.load %arg1[%c21] : memref<296xf32, #tpu.memory_space<smem>>
    %772 = vector.broadcast %771 : f32 to vector<8x128xf32>
    %773 = arith.mulf %1, %772 : vector<8x128xf32>
    %c149 = arith.constant 149 : index
    %774 = memref.load %arg1[%c149] : memref<296xf32, #tpu.memory_space<smem>>
    %775 = vector.broadcast %774 : f32 to vector<8x128xf32>
    %776 = arith.addf %773, %775 : vector<8x128xf32>
    %c53 = arith.constant 53 : index
    %777 = memref.load %arg1[%c53] : memref<296xf32, #tpu.memory_space<smem>>
    %778 = vector.broadcast %777 : f32 to vector<8x128xf32>
    %779 = arith.mulf %3, %778 : vector<8x128xf32>
    %780 = arith.addf %776, %779 : vector<8x128xf32>
    %c85 = arith.constant 85 : index
    %781 = memref.load %arg1[%c85] : memref<296xf32, #tpu.memory_space<smem>>
    %782 = vector.broadcast %781 : f32 to vector<8x128xf32>
    %783 = arith.mulf %5, %782 : vector<8x128xf32>
    %784 = arith.addf %780, %783 : vector<8x128xf32>
    %c117 = arith.constant 117 : index
    %785 = memref.load %arg1[%c117] : memref<296xf32, #tpu.memory_space<smem>>
    %786 = vector.broadcast %785 : f32 to vector<8x128xf32>
    %787 = arith.mulf %7, %786 : vector<8x128xf32>
    %788 = arith.addf %784, %787 : vector<8x128xf32>
    %789 = math.tanh %788 : vector<8x128xf32>
    %c244 = arith.constant 244 : index
    %790 = memref.load %arg1[%c244] : memref<296xf32, #tpu.memory_space<smem>>
    %791 = vector.broadcast %790 : f32 to vector<8x128xf32>
    %792 = arith.mulf %789, %791 : vector<8x128xf32>
    %793 = arith.addf %723, %792 : vector<8x128xf32>
    %c245 = arith.constant 245 : index
    %794 = memref.load %arg1[%c245] : memref<296xf32, #tpu.memory_space<smem>>
    %795 = vector.broadcast %794 : f32 to vector<8x128xf32>
    %796 = arith.mulf %789, %795 : vector<8x128xf32>
    %797 = arith.addf %727, %796 : vector<8x128xf32>
    %c246 = arith.constant 246 : index
    %798 = memref.load %arg1[%c246] : memref<296xf32, #tpu.memory_space<smem>>
    %799 = vector.broadcast %798 : f32 to vector<8x128xf32>
    %800 = arith.mulf %789, %799 : vector<8x128xf32>
    %801 = arith.addf %731, %800 : vector<8x128xf32>
    %c247 = arith.constant 247 : index
    %802 = memref.load %arg1[%c247] : memref<296xf32, #tpu.memory_space<smem>>
    %803 = vector.broadcast %802 : f32 to vector<8x128xf32>
    %804 = arith.mulf %789, %803 : vector<8x128xf32>
    %805 = arith.addf %735, %804 : vector<8x128xf32>
    %c22 = arith.constant 22 : index
    %806 = memref.load %arg1[%c22] : memref<296xf32, #tpu.memory_space<smem>>
    %807 = vector.broadcast %806 : f32 to vector<8x128xf32>
    %808 = arith.mulf %1, %807 : vector<8x128xf32>
    %c150 = arith.constant 150 : index
    %809 = memref.load %arg1[%c150] : memref<296xf32, #tpu.memory_space<smem>>
    %810 = vector.broadcast %809 : f32 to vector<8x128xf32>
    %811 = arith.addf %808, %810 : vector<8x128xf32>
    %c54 = arith.constant 54 : index
    %812 = memref.load %arg1[%c54] : memref<296xf32, #tpu.memory_space<smem>>
    %813 = vector.broadcast %812 : f32 to vector<8x128xf32>
    %814 = arith.mulf %3, %813 : vector<8x128xf32>
    %815 = arith.addf %811, %814 : vector<8x128xf32>
    %c86 = arith.constant 86 : index
    %816 = memref.load %arg1[%c86] : memref<296xf32, #tpu.memory_space<smem>>
    %817 = vector.broadcast %816 : f32 to vector<8x128xf32>
    %818 = arith.mulf %5, %817 : vector<8x128xf32>
    %819 = arith.addf %815, %818 : vector<8x128xf32>
    %c118 = arith.constant 118 : index
    %820 = memref.load %arg1[%c118] : memref<296xf32, #tpu.memory_space<smem>>
    %821 = vector.broadcast %820 : f32 to vector<8x128xf32>
    %822 = arith.mulf %7, %821 : vector<8x128xf32>
    %823 = arith.addf %819, %822 : vector<8x128xf32>
    %824 = math.tanh %823 : vector<8x128xf32>
    %c248 = arith.constant 248 : index
    %825 = memref.load %arg1[%c248] : memref<296xf32, #tpu.memory_space<smem>>
    %826 = vector.broadcast %825 : f32 to vector<8x128xf32>
    %827 = arith.mulf %824, %826 : vector<8x128xf32>
    %828 = arith.addf %758, %827 : vector<8x128xf32>
    %c249 = arith.constant 249 : index
    %829 = memref.load %arg1[%c249] : memref<296xf32, #tpu.memory_space<smem>>
    %830 = vector.broadcast %829 : f32 to vector<8x128xf32>
    %831 = arith.mulf %824, %830 : vector<8x128xf32>
    %832 = arith.addf %762, %831 : vector<8x128xf32>
    %c250 = arith.constant 250 : index
    %833 = memref.load %arg1[%c250] : memref<296xf32, #tpu.memory_space<smem>>
    %834 = vector.broadcast %833 : f32 to vector<8x128xf32>
    %835 = arith.mulf %824, %834 : vector<8x128xf32>
    %836 = arith.addf %766, %835 : vector<8x128xf32>
    %c251 = arith.constant 251 : index
    %837 = memref.load %arg1[%c251] : memref<296xf32, #tpu.memory_space<smem>>
    %838 = vector.broadcast %837 : f32 to vector<8x128xf32>
    %839 = arith.mulf %824, %838 : vector<8x128xf32>
    %840 = arith.addf %770, %839 : vector<8x128xf32>
    %c23 = arith.constant 23 : index
    %841 = memref.load %arg1[%c23] : memref<296xf32, #tpu.memory_space<smem>>
    %842 = vector.broadcast %841 : f32 to vector<8x128xf32>
    %843 = arith.mulf %1, %842 : vector<8x128xf32>
    %c151 = arith.constant 151 : index
    %844 = memref.load %arg1[%c151] : memref<296xf32, #tpu.memory_space<smem>>
    %845 = vector.broadcast %844 : f32 to vector<8x128xf32>
    %846 = arith.addf %843, %845 : vector<8x128xf32>
    %c55 = arith.constant 55 : index
    %847 = memref.load %arg1[%c55] : memref<296xf32, #tpu.memory_space<smem>>
    %848 = vector.broadcast %847 : f32 to vector<8x128xf32>
    %849 = arith.mulf %3, %848 : vector<8x128xf32>
    %850 = arith.addf %846, %849 : vector<8x128xf32>
    %c87 = arith.constant 87 : index
    %851 = memref.load %arg1[%c87] : memref<296xf32, #tpu.memory_space<smem>>
    %852 = vector.broadcast %851 : f32 to vector<8x128xf32>
    %853 = arith.mulf %5, %852 : vector<8x128xf32>
    %854 = arith.addf %850, %853 : vector<8x128xf32>
    %c119 = arith.constant 119 : index
    %855 = memref.load %arg1[%c119] : memref<296xf32, #tpu.memory_space<smem>>
    %856 = vector.broadcast %855 : f32 to vector<8x128xf32>
    %857 = arith.mulf %7, %856 : vector<8x128xf32>
    %858 = arith.addf %854, %857 : vector<8x128xf32>
    %859 = math.tanh %858 : vector<8x128xf32>
    %c252 = arith.constant 252 : index
    %860 = memref.load %arg1[%c252] : memref<296xf32, #tpu.memory_space<smem>>
    %861 = vector.broadcast %860 : f32 to vector<8x128xf32>
    %862 = arith.mulf %859, %861 : vector<8x128xf32>
    %863 = arith.addf %793, %862 : vector<8x128xf32>
    %c253 = arith.constant 253 : index
    %864 = memref.load %arg1[%c253] : memref<296xf32, #tpu.memory_space<smem>>
    %865 = vector.broadcast %864 : f32 to vector<8x128xf32>
    %866 = arith.mulf %859, %865 : vector<8x128xf32>
    %867 = arith.addf %797, %866 : vector<8x128xf32>
    %c254 = arith.constant 254 : index
    %868 = memref.load %arg1[%c254] : memref<296xf32, #tpu.memory_space<smem>>
    %869 = vector.broadcast %868 : f32 to vector<8x128xf32>
    %870 = arith.mulf %859, %869 : vector<8x128xf32>
    %871 = arith.addf %801, %870 : vector<8x128xf32>
    %c255 = arith.constant 255 : index
    %872 = memref.load %arg1[%c255] : memref<296xf32, #tpu.memory_space<smem>>
    %873 = vector.broadcast %872 : f32 to vector<8x128xf32>
    %874 = arith.mulf %859, %873 : vector<8x128xf32>
    %875 = arith.addf %805, %874 : vector<8x128xf32>
    %c24 = arith.constant 24 : index
    %876 = memref.load %arg1[%c24] : memref<296xf32, #tpu.memory_space<smem>>
    %877 = vector.broadcast %876 : f32 to vector<8x128xf32>
    %878 = arith.mulf %1, %877 : vector<8x128xf32>
    %c152 = arith.constant 152 : index
    %879 = memref.load %arg1[%c152] : memref<296xf32, #tpu.memory_space<smem>>
    %880 = vector.broadcast %879 : f32 to vector<8x128xf32>
    %881 = arith.addf %878, %880 : vector<8x128xf32>
    %c56 = arith.constant 56 : index
    %882 = memref.load %arg1[%c56] : memref<296xf32, #tpu.memory_space<smem>>
    %883 = vector.broadcast %882 : f32 to vector<8x128xf32>
    %884 = arith.mulf %3, %883 : vector<8x128xf32>
    %885 = arith.addf %881, %884 : vector<8x128xf32>
    %c88 = arith.constant 88 : index
    %886 = memref.load %arg1[%c88] : memref<296xf32, #tpu.memory_space<smem>>
    %887 = vector.broadcast %886 : f32 to vector<8x128xf32>
    %888 = arith.mulf %5, %887 : vector<8x128xf32>
    %889 = arith.addf %885, %888 : vector<8x128xf32>
    %c120 = arith.constant 120 : index
    %890 = memref.load %arg1[%c120] : memref<296xf32, #tpu.memory_space<smem>>
    %891 = vector.broadcast %890 : f32 to vector<8x128xf32>
    %892 = arith.mulf %7, %891 : vector<8x128xf32>
    %893 = arith.addf %889, %892 : vector<8x128xf32>
    %894 = math.tanh %893 : vector<8x128xf32>
    %c256 = arith.constant 256 : index
    %895 = memref.load %arg1[%c256] : memref<296xf32, #tpu.memory_space<smem>>
    %896 = vector.broadcast %895 : f32 to vector<8x128xf32>
    %897 = arith.mulf %894, %896 : vector<8x128xf32>
    %898 = arith.addf %828, %897 : vector<8x128xf32>
    %c257 = arith.constant 257 : index
    %899 = memref.load %arg1[%c257] : memref<296xf32, #tpu.memory_space<smem>>
    %900 = vector.broadcast %899 : f32 to vector<8x128xf32>
    %901 = arith.mulf %894, %900 : vector<8x128xf32>
    %902 = arith.addf %832, %901 : vector<8x128xf32>
    %c258 = arith.constant 258 : index
    %903 = memref.load %arg1[%c258] : memref<296xf32, #tpu.memory_space<smem>>
    %904 = vector.broadcast %903 : f32 to vector<8x128xf32>
    %905 = arith.mulf %894, %904 : vector<8x128xf32>
    %906 = arith.addf %836, %905 : vector<8x128xf32>
    %c259 = arith.constant 259 : index
    %907 = memref.load %arg1[%c259] : memref<296xf32, #tpu.memory_space<smem>>
    %908 = vector.broadcast %907 : f32 to vector<8x128xf32>
    %909 = arith.mulf %894, %908 : vector<8x128xf32>
    %910 = arith.addf %840, %909 : vector<8x128xf32>
    %c25 = arith.constant 25 : index
    %911 = memref.load %arg1[%c25] : memref<296xf32, #tpu.memory_space<smem>>
    %912 = vector.broadcast %911 : f32 to vector<8x128xf32>
    %913 = arith.mulf %1, %912 : vector<8x128xf32>
    %c153 = arith.constant 153 : index
    %914 = memref.load %arg1[%c153] : memref<296xf32, #tpu.memory_space<smem>>
    %915 = vector.broadcast %914 : f32 to vector<8x128xf32>
    %916 = arith.addf %913, %915 : vector<8x128xf32>
    %c57 = arith.constant 57 : index
    %917 = memref.load %arg1[%c57] : memref<296xf32, #tpu.memory_space<smem>>
    %918 = vector.broadcast %917 : f32 to vector<8x128xf32>
    %919 = arith.mulf %3, %918 : vector<8x128xf32>
    %920 = arith.addf %916, %919 : vector<8x128xf32>
    %c89 = arith.constant 89 : index
    %921 = memref.load %arg1[%c89] : memref<296xf32, #tpu.memory_space<smem>>
    %922 = vector.broadcast %921 : f32 to vector<8x128xf32>
    %923 = arith.mulf %5, %922 : vector<8x128xf32>
    %924 = arith.addf %920, %923 : vector<8x128xf32>
    %c121 = arith.constant 121 : index
    %925 = memref.load %arg1[%c121] : memref<296xf32, #tpu.memory_space<smem>>
    %926 = vector.broadcast %925 : f32 to vector<8x128xf32>
    %927 = arith.mulf %7, %926 : vector<8x128xf32>
    %928 = arith.addf %924, %927 : vector<8x128xf32>
    %929 = math.tanh %928 : vector<8x128xf32>
    %c260 = arith.constant 260 : index
    %930 = memref.load %arg1[%c260] : memref<296xf32, #tpu.memory_space<smem>>
    %931 = vector.broadcast %930 : f32 to vector<8x128xf32>
    %932 = arith.mulf %929, %931 : vector<8x128xf32>
    %933 = arith.addf %863, %932 : vector<8x128xf32>
    %c261 = arith.constant 261 : index
    %934 = memref.load %arg1[%c261] : memref<296xf32, #tpu.memory_space<smem>>
    %935 = vector.broadcast %934 : f32 to vector<8x128xf32>
    %936 = arith.mulf %929, %935 : vector<8x128xf32>
    %937 = arith.addf %867, %936 : vector<8x128xf32>
    %c262 = arith.constant 262 : index
    %938 = memref.load %arg1[%c262] : memref<296xf32, #tpu.memory_space<smem>>
    %939 = vector.broadcast %938 : f32 to vector<8x128xf32>
    %940 = arith.mulf %929, %939 : vector<8x128xf32>
    %941 = arith.addf %871, %940 : vector<8x128xf32>
    %c263 = arith.constant 263 : index
    %942 = memref.load %arg1[%c263] : memref<296xf32, #tpu.memory_space<smem>>
    %943 = vector.broadcast %942 : f32 to vector<8x128xf32>
    %944 = arith.mulf %929, %943 : vector<8x128xf32>
    %945 = arith.addf %875, %944 : vector<8x128xf32>
    %c26 = arith.constant 26 : index
    %946 = memref.load %arg1[%c26] : memref<296xf32, #tpu.memory_space<smem>>
    %947 = vector.broadcast %946 : f32 to vector<8x128xf32>
    %948 = arith.mulf %1, %947 : vector<8x128xf32>
    %c154 = arith.constant 154 : index
    %949 = memref.load %arg1[%c154] : memref<296xf32, #tpu.memory_space<smem>>
    %950 = vector.broadcast %949 : f32 to vector<8x128xf32>
    %951 = arith.addf %948, %950 : vector<8x128xf32>
    %c58 = arith.constant 58 : index
    %952 = memref.load %arg1[%c58] : memref<296xf32, #tpu.memory_space<smem>>
    %953 = vector.broadcast %952 : f32 to vector<8x128xf32>
    %954 = arith.mulf %3, %953 : vector<8x128xf32>
    %955 = arith.addf %951, %954 : vector<8x128xf32>
    %c90 = arith.constant 90 : index
    %956 = memref.load %arg1[%c90] : memref<296xf32, #tpu.memory_space<smem>>
    %957 = vector.broadcast %956 : f32 to vector<8x128xf32>
    %958 = arith.mulf %5, %957 : vector<8x128xf32>
    %959 = arith.addf %955, %958 : vector<8x128xf32>
    %c122 = arith.constant 122 : index
    %960 = memref.load %arg1[%c122] : memref<296xf32, #tpu.memory_space<smem>>
    %961 = vector.broadcast %960 : f32 to vector<8x128xf32>
    %962 = arith.mulf %7, %961 : vector<8x128xf32>
    %963 = arith.addf %959, %962 : vector<8x128xf32>
    %964 = math.tanh %963 : vector<8x128xf32>
    %c264 = arith.constant 264 : index
    %965 = memref.load %arg1[%c264] : memref<296xf32, #tpu.memory_space<smem>>
    %966 = vector.broadcast %965 : f32 to vector<8x128xf32>
    %967 = arith.mulf %964, %966 : vector<8x128xf32>
    %968 = arith.addf %898, %967 : vector<8x128xf32>
    %c265 = arith.constant 265 : index
    %969 = memref.load %arg1[%c265] : memref<296xf32, #tpu.memory_space<smem>>
    %970 = vector.broadcast %969 : f32 to vector<8x128xf32>
    %971 = arith.mulf %964, %970 : vector<8x128xf32>
    %972 = arith.addf %902, %971 : vector<8x128xf32>
    %c266 = arith.constant 266 : index
    %973 = memref.load %arg1[%c266] : memref<296xf32, #tpu.memory_space<smem>>
    %974 = vector.broadcast %973 : f32 to vector<8x128xf32>
    %975 = arith.mulf %964, %974 : vector<8x128xf32>
    %976 = arith.addf %906, %975 : vector<8x128xf32>
    %c267 = arith.constant 267 : index
    %977 = memref.load %arg1[%c267] : memref<296xf32, #tpu.memory_space<smem>>
    %978 = vector.broadcast %977 : f32 to vector<8x128xf32>
    %979 = arith.mulf %964, %978 : vector<8x128xf32>
    %980 = arith.addf %910, %979 : vector<8x128xf32>
    %c27 = arith.constant 27 : index
    %981 = memref.load %arg1[%c27] : memref<296xf32, #tpu.memory_space<smem>>
    %982 = vector.broadcast %981 : f32 to vector<8x128xf32>
    %983 = arith.mulf %1, %982 : vector<8x128xf32>
    %c155 = arith.constant 155 : index
    %984 = memref.load %arg1[%c155] : memref<296xf32, #tpu.memory_space<smem>>
    %985 = vector.broadcast %984 : f32 to vector<8x128xf32>
    %986 = arith.addf %983, %985 : vector<8x128xf32>
    %c59 = arith.constant 59 : index
    %987 = memref.load %arg1[%c59] : memref<296xf32, #tpu.memory_space<smem>>
    %988 = vector.broadcast %987 : f32 to vector<8x128xf32>
    %989 = arith.mulf %3, %988 : vector<8x128xf32>
    %990 = arith.addf %986, %989 : vector<8x128xf32>
    %c91 = arith.constant 91 : index
    %991 = memref.load %arg1[%c91] : memref<296xf32, #tpu.memory_space<smem>>
    %992 = vector.broadcast %991 : f32 to vector<8x128xf32>
    %993 = arith.mulf %5, %992 : vector<8x128xf32>
    %994 = arith.addf %990, %993 : vector<8x128xf32>
    %c123 = arith.constant 123 : index
    %995 = memref.load %arg1[%c123] : memref<296xf32, #tpu.memory_space<smem>>
    %996 = vector.broadcast %995 : f32 to vector<8x128xf32>
    %997 = arith.mulf %7, %996 : vector<8x128xf32>
    %998 = arith.addf %994, %997 : vector<8x128xf32>
    %999 = math.tanh %998 : vector<8x128xf32>
    %c268 = arith.constant 268 : index
    %1000 = memref.load %arg1[%c268] : memref<296xf32, #tpu.memory_space<smem>>
    %1001 = vector.broadcast %1000 : f32 to vector<8x128xf32>
    %1002 = arith.mulf %999, %1001 : vector<8x128xf32>
    %1003 = arith.addf %933, %1002 : vector<8x128xf32>
    %c269 = arith.constant 269 : index
    %1004 = memref.load %arg1[%c269] : memref<296xf32, #tpu.memory_space<smem>>
    %1005 = vector.broadcast %1004 : f32 to vector<8x128xf32>
    %1006 = arith.mulf %999, %1005 : vector<8x128xf32>
    %1007 = arith.addf %937, %1006 : vector<8x128xf32>
    %c270 = arith.constant 270 : index
    %1008 = memref.load %arg1[%c270] : memref<296xf32, #tpu.memory_space<smem>>
    %1009 = vector.broadcast %1008 : f32 to vector<8x128xf32>
    %1010 = arith.mulf %999, %1009 : vector<8x128xf32>
    %1011 = arith.addf %941, %1010 : vector<8x128xf32>
    %c271 = arith.constant 271 : index
    %1012 = memref.load %arg1[%c271] : memref<296xf32, #tpu.memory_space<smem>>
    %1013 = vector.broadcast %1012 : f32 to vector<8x128xf32>
    %1014 = arith.mulf %999, %1013 : vector<8x128xf32>
    %1015 = arith.addf %945, %1014 : vector<8x128xf32>
    %c28 = arith.constant 28 : index
    %1016 = memref.load %arg1[%c28] : memref<296xf32, #tpu.memory_space<smem>>
    %1017 = vector.broadcast %1016 : f32 to vector<8x128xf32>
    %1018 = arith.mulf %1, %1017 : vector<8x128xf32>
    %c156 = arith.constant 156 : index
    %1019 = memref.load %arg1[%c156] : memref<296xf32, #tpu.memory_space<smem>>
    %1020 = vector.broadcast %1019 : f32 to vector<8x128xf32>
    %1021 = arith.addf %1018, %1020 : vector<8x128xf32>
    %c60 = arith.constant 60 : index
    %1022 = memref.load %arg1[%c60] : memref<296xf32, #tpu.memory_space<smem>>
    %1023 = vector.broadcast %1022 : f32 to vector<8x128xf32>
    %1024 = arith.mulf %3, %1023 : vector<8x128xf32>
    %1025 = arith.addf %1021, %1024 : vector<8x128xf32>
    %c92 = arith.constant 92 : index
    %1026 = memref.load %arg1[%c92] : memref<296xf32, #tpu.memory_space<smem>>
    %1027 = vector.broadcast %1026 : f32 to vector<8x128xf32>
    %1028 = arith.mulf %5, %1027 : vector<8x128xf32>
    %1029 = arith.addf %1025, %1028 : vector<8x128xf32>
    %c124 = arith.constant 124 : index
    %1030 = memref.load %arg1[%c124] : memref<296xf32, #tpu.memory_space<smem>>
    %1031 = vector.broadcast %1030 : f32 to vector<8x128xf32>
    %1032 = arith.mulf %7, %1031 : vector<8x128xf32>
    %1033 = arith.addf %1029, %1032 : vector<8x128xf32>
    %1034 = math.tanh %1033 : vector<8x128xf32>
    %c272 = arith.constant 272 : index
    %1035 = memref.load %arg1[%c272] : memref<296xf32, #tpu.memory_space<smem>>
    %1036 = vector.broadcast %1035 : f32 to vector<8x128xf32>
    %1037 = arith.mulf %1034, %1036 : vector<8x128xf32>
    %1038 = arith.addf %968, %1037 : vector<8x128xf32>
    %c273 = arith.constant 273 : index
    %1039 = memref.load %arg1[%c273] : memref<296xf32, #tpu.memory_space<smem>>
    %1040 = vector.broadcast %1039 : f32 to vector<8x128xf32>
    %1041 = arith.mulf %1034, %1040 : vector<8x128xf32>
    %1042 = arith.addf %972, %1041 : vector<8x128xf32>
    %c274 = arith.constant 274 : index
    %1043 = memref.load %arg1[%c274] : memref<296xf32, #tpu.memory_space<smem>>
    %1044 = vector.broadcast %1043 : f32 to vector<8x128xf32>
    %1045 = arith.mulf %1034, %1044 : vector<8x128xf32>
    %1046 = arith.addf %976, %1045 : vector<8x128xf32>
    %c275 = arith.constant 275 : index
    %1047 = memref.load %arg1[%c275] : memref<296xf32, #tpu.memory_space<smem>>
    %1048 = vector.broadcast %1047 : f32 to vector<8x128xf32>
    %1049 = arith.mulf %1034, %1048 : vector<8x128xf32>
    %1050 = arith.addf %980, %1049 : vector<8x128xf32>
    %c29 = arith.constant 29 : index
    %1051 = memref.load %arg1[%c29] : memref<296xf32, #tpu.memory_space<smem>>
    %1052 = vector.broadcast %1051 : f32 to vector<8x128xf32>
    %1053 = arith.mulf %1, %1052 : vector<8x128xf32>
    %c157 = arith.constant 157 : index
    %1054 = memref.load %arg1[%c157] : memref<296xf32, #tpu.memory_space<smem>>
    %1055 = vector.broadcast %1054 : f32 to vector<8x128xf32>
    %1056 = arith.addf %1053, %1055 : vector<8x128xf32>
    %c61 = arith.constant 61 : index
    %1057 = memref.load %arg1[%c61] : memref<296xf32, #tpu.memory_space<smem>>
    %1058 = vector.broadcast %1057 : f32 to vector<8x128xf32>
    %1059 = arith.mulf %3, %1058 : vector<8x128xf32>
    %1060 = arith.addf %1056, %1059 : vector<8x128xf32>
    %c93 = arith.constant 93 : index
    %1061 = memref.load %arg1[%c93] : memref<296xf32, #tpu.memory_space<smem>>
    %1062 = vector.broadcast %1061 : f32 to vector<8x128xf32>
    %1063 = arith.mulf %5, %1062 : vector<8x128xf32>
    %1064 = arith.addf %1060, %1063 : vector<8x128xf32>
    %c125 = arith.constant 125 : index
    %1065 = memref.load %arg1[%c125] : memref<296xf32, #tpu.memory_space<smem>>
    %1066 = vector.broadcast %1065 : f32 to vector<8x128xf32>
    %1067 = arith.mulf %7, %1066 : vector<8x128xf32>
    %1068 = arith.addf %1064, %1067 : vector<8x128xf32>
    %1069 = math.tanh %1068 : vector<8x128xf32>
    %c276 = arith.constant 276 : index
    %1070 = memref.load %arg1[%c276] : memref<296xf32, #tpu.memory_space<smem>>
    %1071 = vector.broadcast %1070 : f32 to vector<8x128xf32>
    %1072 = arith.mulf %1069, %1071 : vector<8x128xf32>
    %1073 = arith.addf %1003, %1072 : vector<8x128xf32>
    %c277 = arith.constant 277 : index
    %1074 = memref.load %arg1[%c277] : memref<296xf32, #tpu.memory_space<smem>>
    %1075 = vector.broadcast %1074 : f32 to vector<8x128xf32>
    %1076 = arith.mulf %1069, %1075 : vector<8x128xf32>
    %1077 = arith.addf %1007, %1076 : vector<8x128xf32>
    %c278 = arith.constant 278 : index
    %1078 = memref.load %arg1[%c278] : memref<296xf32, #tpu.memory_space<smem>>
    %1079 = vector.broadcast %1078 : f32 to vector<8x128xf32>
    %1080 = arith.mulf %1069, %1079 : vector<8x128xf32>
    %1081 = arith.addf %1011, %1080 : vector<8x128xf32>
    %c279 = arith.constant 279 : index
    %1082 = memref.load %arg1[%c279] : memref<296xf32, #tpu.memory_space<smem>>
    %1083 = vector.broadcast %1082 : f32 to vector<8x128xf32>
    %1084 = arith.mulf %1069, %1083 : vector<8x128xf32>
    %1085 = arith.addf %1015, %1084 : vector<8x128xf32>
    %c30 = arith.constant 30 : index
    %1086 = memref.load %arg1[%c30] : memref<296xf32, #tpu.memory_space<smem>>
    %1087 = vector.broadcast %1086 : f32 to vector<8x128xf32>
    %1088 = arith.mulf %1, %1087 : vector<8x128xf32>
    %c158 = arith.constant 158 : index
    %1089 = memref.load %arg1[%c158] : memref<296xf32, #tpu.memory_space<smem>>
    %1090 = vector.broadcast %1089 : f32 to vector<8x128xf32>
    %1091 = arith.addf %1088, %1090 : vector<8x128xf32>
    %c62 = arith.constant 62 : index
    %1092 = memref.load %arg1[%c62] : memref<296xf32, #tpu.memory_space<smem>>
    %1093 = vector.broadcast %1092 : f32 to vector<8x128xf32>
    %1094 = arith.mulf %3, %1093 : vector<8x128xf32>
    %1095 = arith.addf %1091, %1094 : vector<8x128xf32>
    %c94 = arith.constant 94 : index
    %1096 = memref.load %arg1[%c94] : memref<296xf32, #tpu.memory_space<smem>>
    %1097 = vector.broadcast %1096 : f32 to vector<8x128xf32>
    %1098 = arith.mulf %5, %1097 : vector<8x128xf32>
    %1099 = arith.addf %1095, %1098 : vector<8x128xf32>
    %c126 = arith.constant 126 : index
    %1100 = memref.load %arg1[%c126] : memref<296xf32, #tpu.memory_space<smem>>
    %1101 = vector.broadcast %1100 : f32 to vector<8x128xf32>
    %1102 = arith.mulf %7, %1101 : vector<8x128xf32>
    %1103 = arith.addf %1099, %1102 : vector<8x128xf32>
    %1104 = math.tanh %1103 : vector<8x128xf32>
    %c280 = arith.constant 280 : index
    %1105 = memref.load %arg1[%c280] : memref<296xf32, #tpu.memory_space<smem>>
    %1106 = vector.broadcast %1105 : f32 to vector<8x128xf32>
    %1107 = arith.mulf %1104, %1106 : vector<8x128xf32>
    %1108 = arith.addf %1038, %1107 : vector<8x128xf32>
    %c281 = arith.constant 281 : index
    %1109 = memref.load %arg1[%c281] : memref<296xf32, #tpu.memory_space<smem>>
    %1110 = vector.broadcast %1109 : f32 to vector<8x128xf32>
    %1111 = arith.mulf %1104, %1110 : vector<8x128xf32>
    %1112 = arith.addf %1042, %1111 : vector<8x128xf32>
    %c282 = arith.constant 282 : index
    %1113 = memref.load %arg1[%c282] : memref<296xf32, #tpu.memory_space<smem>>
    %1114 = vector.broadcast %1113 : f32 to vector<8x128xf32>
    %1115 = arith.mulf %1104, %1114 : vector<8x128xf32>
    %1116 = arith.addf %1046, %1115 : vector<8x128xf32>
    %c283 = arith.constant 283 : index
    %1117 = memref.load %arg1[%c283] : memref<296xf32, #tpu.memory_space<smem>>
    %1118 = vector.broadcast %1117 : f32 to vector<8x128xf32>
    %1119 = arith.mulf %1104, %1118 : vector<8x128xf32>
    %1120 = arith.addf %1050, %1119 : vector<8x128xf32>
    %c31 = arith.constant 31 : index
    %1121 = memref.load %arg1[%c31] : memref<296xf32, #tpu.memory_space<smem>>
    %1122 = vector.broadcast %1121 : f32 to vector<8x128xf32>
    %1123 = arith.mulf %1, %1122 : vector<8x128xf32>
    %c159 = arith.constant 159 : index
    %1124 = memref.load %arg1[%c159] : memref<296xf32, #tpu.memory_space<smem>>
    %1125 = vector.broadcast %1124 : f32 to vector<8x128xf32>
    %1126 = arith.addf %1123, %1125 : vector<8x128xf32>
    %c63 = arith.constant 63 : index
    %1127 = memref.load %arg1[%c63] : memref<296xf32, #tpu.memory_space<smem>>
    %1128 = vector.broadcast %1127 : f32 to vector<8x128xf32>
    %1129 = arith.mulf %3, %1128 : vector<8x128xf32>
    %1130 = arith.addf %1126, %1129 : vector<8x128xf32>
    %c95 = arith.constant 95 : index
    %1131 = memref.load %arg1[%c95] : memref<296xf32, #tpu.memory_space<smem>>
    %1132 = vector.broadcast %1131 : f32 to vector<8x128xf32>
    %1133 = arith.mulf %5, %1132 : vector<8x128xf32>
    %1134 = arith.addf %1130, %1133 : vector<8x128xf32>
    %c127 = arith.constant 127 : index
    %1135 = memref.load %arg1[%c127] : memref<296xf32, #tpu.memory_space<smem>>
    %1136 = vector.broadcast %1135 : f32 to vector<8x128xf32>
    %1137 = arith.mulf %7, %1136 : vector<8x128xf32>
    %1138 = arith.addf %1134, %1137 : vector<8x128xf32>
    %1139 = math.tanh %1138 : vector<8x128xf32>
    %c284 = arith.constant 284 : index
    %1140 = memref.load %arg1[%c284] : memref<296xf32, #tpu.memory_space<smem>>
    %1141 = vector.broadcast %1140 : f32 to vector<8x128xf32>
    %1142 = arith.mulf %1139, %1141 : vector<8x128xf32>
    %1143 = arith.addf %1073, %1142 : vector<8x128xf32>
    %c285 = arith.constant 285 : index
    %1144 = memref.load %arg1[%c285] : memref<296xf32, #tpu.memory_space<smem>>
    %1145 = vector.broadcast %1144 : f32 to vector<8x128xf32>
    %1146 = arith.mulf %1139, %1145 : vector<8x128xf32>
    %1147 = arith.addf %1077, %1146 : vector<8x128xf32>
    %c286 = arith.constant 286 : index
    %1148 = memref.load %arg1[%c286] : memref<296xf32, #tpu.memory_space<smem>>
    %1149 = vector.broadcast %1148 : f32 to vector<8x128xf32>
    %1150 = arith.mulf %1139, %1149 : vector<8x128xf32>
    %1151 = arith.addf %1081, %1150 : vector<8x128xf32>
    %c287 = arith.constant 287 : index
    %1152 = memref.load %arg1[%c287] : memref<296xf32, #tpu.memory_space<smem>>
    %1153 = vector.broadcast %1152 : f32 to vector<8x128xf32>
    %1154 = arith.mulf %1139, %1153 : vector<8x128xf32>
    %1155 = arith.addf %1085, %1154 : vector<8x128xf32>
    %1156 = arith.addf %1108, %1143 : vector<8x128xf32>
    %c0_15 = arith.constant 0 : index
    %c0_16 = arith.constant 0 : index
    %c0_17 = arith.constant 0 : index
    %1157 = vector.load %arg3[%c0_15, %c0_16, %c0_17] : memref<4x8x128xf32, #tpu.memory_space<vmem>>, vector<1x8x128xf32>
    %1158 = vector.shape_cast %1157 : vector<1x8x128xf32> to vector<8x128xf32>
    %1159 = vector.shape_cast %1156 : vector<8x128xf32> to vector<1x8x128xf32>
    tpu.vector_store %arg3[%c0_15, %c0_16, %c0_17], %1159 {strides = array<i32>} : memref<4x8x128xf32, #tpu.memory_space<vmem>>, vector<1x8x128xf32>,
    %1160 = arith.addf %1112, %1147 : vector<8x128xf32>
    %c1_18 = arith.constant 1 : index
    %c0_19 = arith.constant 0 : index
    %c0_20 = arith.constant 0 : index
    %1161 = vector.load %arg3[%c1_18, %c0_19, %c0_20] : memref<4x8x128xf32, #tpu.memory_space<vmem>>, vector<1x8x128xf32>
    %1162 = vector.shape_cast %1161 : vector<1x8x128xf32> to vector<8x128xf32>
    %1163 = vector.shape_cast %1160 : vector<8x128xf32> to vector<1x8x128xf32>
    tpu.vector_store %arg3[%c1_18, %c0_19, %c0_20], %1163 {strides = array<i32>} : memref<4x8x128xf32, #tpu.memory_space<vmem>>, vector<1x8x128xf32>,
    %1164 = arith.addf %1116, %1151 : vector<8x128xf32>
    %c2_21 = arith.constant 2 : index
    %c0_22 = arith.constant 0 : index
    %c0_23 = arith.constant 0 : index
    %1165 = vector.load %arg3[%c2_21, %c0_22, %c0_23] : memref<4x8x128xf32, #tpu.memory_space<vmem>>, vector<1x8x128xf32>
    %1166 = vector.shape_cast %1165 : vector<1x8x128xf32> to vector<8x128xf32>
    %1167 = vector.shape_cast %1164 : vector<8x128xf32> to vector<1x8x128xf32>
    tpu.vector_store %arg3[%c2_21, %c0_22, %c0_23], %1167 {strides = array<i32>} : memref<4x8x128xf32, #tpu.memory_space<vmem>>, vector<1x8x128xf32>,
    %1168 = arith.addf %1120, %1155 : vector<8x128xf32>
    %c3_24 = arith.constant 3 : index
    %c0_25 = arith.constant 0 : index
    %c0_26 = arith.constant 0 : index
    %1169 = vector.load %arg3[%c3_24, %c0_25, %c0_26] : memref<4x8x128xf32, #tpu.memory_space<vmem>>, vector<1x8x128xf32>
    %1170 = vector.shape_cast %1169 : vector<1x8x128xf32> to vector<8x128xf32>
    %1171 = vector.shape_cast %1168 : vector<8x128xf32> to vector<1x8x128xf32>
    tpu.vector_store %arg3[%c3_24, %c0_25, %c0_26], %1171 {strides = array<i32>} : memref<4x8x128xf32, #tpu.memory_space<vmem>>, vector<1x8x128xf32>,
    return
  }
  func.func @transform_0(%arg0: i32) -> i32 {
    %c0_i32 = arith.constant 0 : i32
    %c0_i32_0 = arith.constant 0 : i32
    return %c0_i32 : i32
  }
  func.func @transform_1(%arg0: i32) -> (i32, i32, i32) {
    %c0_i32 = arith.constant 0 : i32
    %c0_i32_0 = arith.constant 0 : i32
    %c0_i32_1 = arith.constant 0 : i32
    return %c0_i32, %arg0, %c0_i32_0 : i32, i32, i32
  }
  func.func @transform_2(%arg0: i32) -> (i32, i32, i32) {
    %c0_i32 = arith.constant 0 : i32
    %c0_i32_0 = arith.constant 0 : i32
    %c0_i32_1 = arith.constant 0 : i32
    return %c0_i32, %arg0, %c0_i32_0 : i32, i32, i32
  }
}

</mosaic_0001>

<llo_original>
// kernel: _hybrid_dynamics_impl.1
$region0: #{_hybrid_dynamics_impl.1}
  #allocation0 [shape = 'u32[]', space=smem, size = 0x4, offset = 0x4, fixed_abs, tag = 'smem constant byte address 0x4 - core index']
  #allocation1 [shape = 'u32[72,128]{1,0:T(1,128)}', space=vmem, size = 0x9000, scoped, tag = 'internal scratch']
  %s0 = inlined_call_operand.vmem [shape: f32[296], index: 0, kind: input, shape index: {}]
  %s1 = inlined_call_operand.vmem [shape: f32[4,8,128], index: 1, kind: input, shape index: {}]
  %s2 = inlined_call_operand.vmem [shape: f32[4,8,128], index: 2, kind: output, shape index: {}]
  %s3 = sld [smem:[#allocation0]]
  $region22: #{_hybrid_dynamics_impl.1} parent=0
    _
  %s5 = ssub.s32 1, %s3
  %s6 = scalar_select 0, %s5, %s3
  $region1: #{_hybrid_dynamics_impl.1} parent=0
    #allocation2 [shape = 'u8[1536]{0}', space=smem, size = 0x600, scoped, tag = 'input window, operand 0, single buffered']
    #allocation3 [shape = 's32[1]{0}', space=sflag, size = 0x4, scoped, tag = 'scoped memory for _hybrid_dynamics_impl.1']
    %7 = vsyncpa [#allocation3], 0
    // Predicated region
    $region2: #{_hybrid_dynamics_impl.1} parent=1 // pred_check
      _
    $region3: #{_hybrid_dynamics_impl.1} parent=1 // pred_check_branch
      %9 = sbr.rel (0) target = $region5
    $region4: #{_hybrid_dynamics_impl.1} parent=1 // pred_region
      %11 = vsyncadd [#allocation3], 0
      %s13 = sshll.u32 %s0, 4
      %s14 = int_to_ptr.vmem [resolvable:$true] %s13
      %16 = dma.vmem_to_smem %s14, 48, [#allocation2], [#allocation3]
    $region5: #{_hybrid_dynamics_impl.1} parent=1 // pred_fallthru
      _
    // Predicated region
    $region6: #{_hybrid_dynamics_impl.1} parent=1 // pred_check
      _
    $region7: #{_hybrid_dynamics_impl.1} parent=1 // pred_check_branch
      %18 = sbr.rel (0) target = $region9
    $region8: #{_hybrid_dynamics_impl.1} parent=1 // pred_region
      _
    $region9: #{_hybrid_dynamics_impl.1} parent=1 // pred_fallthru
      _
    // Predicated region
    $region10: #{_hybrid_dynamics_impl.1} parent=1 // pred_check
      _
    $region11: #{_hybrid_dynamics_impl.1} parent=1 // pred_check_branch
      %20 = sbr.rel (0) target = $region13
    $region12: #{_hybrid_dynamics_impl.1} parent=1 // pred_region
      %22 = dma.done [#allocation3], 48
    $region13: #{_hybrid_dynamics_impl.1} parent=1 // pred_fallthru
      _
    %23 = sfence
    %v24 = vld [vmem:[%s1] sm:$0xff]
    %s25 = scalar_lea.vmem %s1, 8
    %v26 = vld [vmem:[%s25] sm:$0xff]
    %s27 = scalar_lea.vmem %s1, 16
    %v28 = vld [vmem:[%s27] sm:$0xff]
    %s29 = scalar_lea.vmem %s1, 24
    %v30 = vld [vmem:[%s29] sm:$0xff]
    %s31 = sld [smem:[#allocation2 + $0x124]]
    %v32 = vstv %s31
    %v33 = vmul.f32 %v32, %v24
    %s34 = sld [smem:[#allocation2 + $0x120]]
    %v35 = vstv %s34
    %v36 = vadd.f32 %v33, %v35
    %s37 = sld [smem:[#allocation2 + $0x125]]
    %v38 = vstv %s37
    %v39 = vmul.f32 %v38, %v26
    %s40 = sld [smem:[#allocation2 + $0x121]]
    %v41 = vstv %s40
    %v42 = vadd.f32 %v39, %v41
    %s43 = sld [smem:[#allocation2 + $0x126]]
    %v44 = vstv %s43
    %v45 = vmul.f32 %v44, %v28
    %s46 = sld [smem:[#allocation2 + $0x122]]
    %v47 = vstv %s46
    %v48 = vadd.f32 %v45, %v47
    %s49 = sld [smem:[#allocation2 + $0x127]]
    %v50 = vstv %s49
    %v51 = vmul.f32 %v50, %v30
    %s52 = sld [smem:[#allocation2 + $0x123]]
    %v53 = vstv %s52
    %v54 = vadd.f32 %v51, %v53
    %s55 = sld [smem:[#allocation2]]
    %v56 = vstv %s55
    %v57 = vmul.f32 %v24, %v56
    %s58 = sld [smem:[#allocation2 + $0x80]]
    %v59 = vstv %s58
    %v60 = vadd.f32 %v57, %v59
    %s61 = sld [smem:[#allocation2 + $0x20]]
    %v62 = vstv %s61
    %v63 = vmul.f32 %v26, %v62
    %v64 = vadd.f32 %v60, %v63
    %s65 = sld [smem:[#allocation2 + $0x40]]
    %v66 = vstv %s65
    %v67 = vmul.f32 %v28, %v66
    %v68 = vadd.f32 %v64, %v67
    %s69 = sld [smem:[#allocation2 + $0x60]]
    %v70 = vstv %s69
    %v71 = vmul.f32 %v30, %v70
    %v72 = vadd.f32 %v68, %v71
    %v73 = vtanh.pop %v72
    %s74 = sld [smem:[#allocation2 + $0xa0]]
    %v75 = vstv %s74
    %v76 = vmul.f32 %v73, %v75
    %v77 = vadd.f32 %v36, %v76
    %s78 = sld [smem:[#allocation2 + $0xa1]]
    %v79 = vstv %s78
    %v80 = vmul.f32 %v73, %v79
    %v81 = vadd.f32 %v42, %v80
    %s82 = sld [smem:[#allocation2 + $0xa2]]
    %v83 = vstv %s82
    %v84 = vmul.f32 %v73, %v83
    %v85 = vadd.f32 %v48, %v84
    %s86 = sld [smem:[#allocation2 + $0xa3]]
    %v87 = vstv %s86
    %v88 = vmul.f32 %v73, %v87
    %v89 = vadd.f32 %v54, %v88
    %s90 = sld [smem:[#allocation2 + $0x1]]
    %v91 = vstv %s90
    %v92 = vmul.f32 %v24, %v91
    %s93 = sld [smem:[#allocation2 + $0x81]]
    %v94 = vstv %s93
    %v95 = vadd.f32 %v92, %v94
    %s96 = sld [smem:[#allocation2 + $0x21]]
    %v97 = vstv %s96
    %v98 = vmul.f32 %v26, %v97
    %v99 = vadd.f32 %v95, %v98
    %s100 = sld [smem:[#allocation2 + $0x41]]
    %v101 = vstv %s100
    %v102 = vmul.f32 %v28, %v101
    %v103 = vadd.f32 %v99, %v102
    %s104 = sld [smem:[#allocation2 + $0x61]]
    %v105 = vstv %s104
    %v106 = vmul.f32 %v30, %v105
    %v107 = vadd.f32 %v103, %v106
    %v108 = vtanh.pop %v107
    %s109 = sld [smem:[#allocation2 + $0xa4]]
    %v110 = vstv %s109
    %v111 = vmul.f32 %v108, %v110
    %v112 = vadd.f32 %v111, 0.0
    %s113 = sld [smem:[#allocation2 + $0xa5]]
    %v114 = vstv %s113
    %v115 = vmul.f32 %v108, %v114
    %v116 = vadd.f32 %v115, 0.0
    %s117 = sld [smem:[#allocation2 + $0xa6]]
    %v118 = vstv %s117
    %v119 = vmul.f32 %v108, %v118
    %v120 = vadd.f32 %v119, 0.0
    %s121 = sld [smem:[#allocation2 + $0xa7]]
    %v122 = vstv %s121
    %v123 = vmul.f32 %v108, %v122
    %v124 = vadd.f32 %v123, 0.0
    %s125 = sld [smem:[#allocation2 + $0x2]]
    %v126 = vstv %s125
    %v127 = vmul.f32 %v24, %v126
    %s128 = sld [smem:[#allocation2 + $0x82]]
    %v129 = vstv %s128
    %v130 = vadd.f32 %v127, %v129
    %s131 = sld [smem:[#allocation2 + $0x22]]
    %v132 = vstv %s131
    %v133 = vmul.f32 %v26, %v132
    %v134 = vadd.f32 %v130, %v133
    %s135 = sld [smem:[#allocation2 + $0x42]]
    %v136 = vstv %s135
    %v137 = vmul.f32 %v28, %v136
    %v138 = vadd.f32 %v134, %v137
    %s139 = sld [smem:[#allocation2 + $0x62]]
    %v140 = vstv %s139
    %v141 = vmul.f32 %v30, %v140
    %v142 = vadd.f32 %v138, %v141
    %v143 = vtanh.pop %v142
    %s144 = sld [smem:[#allocation2 + $0xa8]]
    %v145 = vstv %s144
    %v146 = vmul.f32 %v143, %v145
    %v147 = vadd.f32 %v77, %v146
    %s148 = sld [smem:[#allocation2 + $0xa9]]
    %v149 = vstv %s148
    %v150 = vmul.f32 %v143, %v149
    %v151 = vadd.f32 %v81, %v150
    %s152 = sld [smem:[#allocation2 + $0xaa]]
    %v153 = vstv %s152
    %v154 = vmul.f32 %v143, %v153
    %v155 = vadd.f32 %v85, %v154
    %s156 = sld [smem:[#allocation2 + $0xab]]
    %v157 = vstv %s156
    %v158 = vmul.f32 %v143, %v157
    %v159 = vadd.f32 %v89, %v158
    %s160 = sld [smem:[#allocation2 + $0x3]]
    %v161 = vstv %s160
    %v162 = vmul.f32 %v24, %v161
    %s163 = sld [smem:[#allocation2 + $0x83]]
    %v164 = vstv %s163
    %v165 = vadd.f32 %v162, %v164
    %s166 = sld [smem:[#allocation2 + $0x23]]
    %v167 = vstv %s166
    %v168 = vmul.f32 %v26, %v167
    %v169 = vadd.f32 %v165, %v168
    %s170 = sld [smem:[#allocation2 + $0x43]]
    %v171 = vstv %s170
    %v172 = vmul.f32 %v28, %v171
    %v173 = vadd.f32 %v169, %v172
    %s174 = sld [smem:[#allocation2 + $0x63]]
    %v175 = vstv %s174
    %v176 = vmul.f32 %v30, %v175
    %v177 = vadd.f32 %v173, %v176
    %v178 = vtanh.pop %v177
    %s179 = sld [smem:[#allocation2 + $0xac]]
    %v180 = vstv %s179
    %v181 = vmul.f32 %v178, %v180
    %v182 = vadd.f32 %v112, %v181
    %s183 = sld [smem:[#allocation2 + $0xad]]
    %v184 = vstv %s183
    %v185 = vmul.f32 %v178, %v184
    %v186 = vadd.f32 %v116, %v185
    %s187 = sld [smem:[#allocation2 + $0xae]]
    %v188 = vstv %s187
    %v189 = vmul.f32 %v178, %v188
    %v190 = vadd.f32 %v120, %v189
    %s191 = sld [smem:[#allocation2 + $0xaf]]
    %v192 = vstv %s191
    %v193 = vmul.f32 %v178, %v192
    %v194 = vadd.f32 %v124, %v193
    %s195 = sld [smem:[#allocation2 + $0x4]]
    %v196 = vstv %s195
    %v197 = vmul.f32 %v24, %v196
    %s198 = sld [smem:[#allocation2 + $0x84]]
    %v199 = vstv %s198
    %v200 = vadd.f32 %v197, %v199
    %s201 = sld [smem:[#allocation2 + $0x24]]
    %v202 = vstv %s201
    %v203 = vmul.f32 %v26, %v202
    %v204 = vadd.f32 %v200, %v203
    %s205 = sld [smem:[#allocation2 + $0x44]]
    %v206 = vstv %s205
    %v207 = vmul.f32 %v28, %v206
    %v208 = vadd.f32 %v204, %v207
    %s209 = sld [smem:[#allocation2 + $0x64]]
    %v210 = vstv %s209
    %v211 = vmul.f32 %v30, %v210
    %v212 = vadd.f32 %v208, %v211
    %v213 = vtanh.pop %v212
    %s214 = sld [smem:[#allocation2 + $0xb0]]
    %v215 = vstv %s214
    %v216 = vmul.f32 %v213, %v215
    %v217 = vadd.f32 %v147, %v216
    %s218 = sld [smem:[#allocation2 + $0xb1]]
    %v219 = vstv %s218
    %v220 = vmul.f32 %v213, %v219
    %v221 = vadd.f32 %v151, %v220
    %s222 = sld [smem:[#allocation2 + $0xb2]]
    %v223 = vstv %s222
    %v224 = vmul.f32 %v213, %v223
    %v225 = vadd.f32 %v155, %v224
    %s226 = sld [smem:[#allocation2 + $0xb3]]
    %v227 = vstv %s226
    %v228 = vmul.f32 %v213, %v227
    %v229 = vadd.f32 %v159, %v228
    %s230 = sld [smem:[#allocation2 + $0x5]]
    %v231 = vstv %s230
    %v232 = vmul.f32 %v24, %v231
    %s233 = sld [smem:[#allocation2 + $0x85]]
    %v234 = vstv %s233
    %v235 = vadd.f32 %v232, %v234
    %s236 = sld [smem:[#allocation2 + $0x25]]
    %v237 = vstv %s236
    %v238 = vmul.f32 %v26, %v237
    %v239 = vadd.f32 %v235, %v238
    %s240 = sld [smem:[#allocation2 + $0x45]]
    %v241 = vstv %s240
    %v242 = vmul.f32 %v28, %v241
    %v243 = vadd.f32 %v239, %v242
    %s244 = sld [smem:[#allocation2 + $0x65]]
    %v245 = vstv %s244
    %v246 = vmul.f32 %v30, %v245
    %v247 = vadd.f32 %v243, %v246
    %v248 = vtanh.pop %v247
    %s249 = sld [smem:[#allocation2 + $0xb4]]
    %v250 = vstv %s249
    %v251 = vmul.f32 %v248, %v250
    %v252 = vadd.f32 %v182, %v251
    %s253 = sld [smem:[#allocation2 + $0xb5]]
    %v254 = vstv %s253
    %v255 = vmul.f32 %v248, %v254
    %v256 = vadd.f32 %v186, %v255
    %s257 = sld [smem:[#allocation2 + $0xb6]]
    %v258 = vstv %s257
    %v259 = vmul.f32 %v248, %v258
    %v260 = vadd.f32 %v190, %v259
    %s261 = sld [smem:[#allocation2 + $0xb7]]
    %v262 = vstv %s261
    %v263 = vmul.f32 %v248, %v262
    %v264 = vadd.f32 %v194, %v263
    %s265 = sld [smem:[#allocation2 + $0x6]]
    %v266 = vstv %s265
    %v267 = vmul.f32 %v24, %v266
    %s268 = sld [smem:[#allocation2 + $0x86]]
    %v269 = vstv %s268
    %v270 = vadd.f32 %v267, %v269
    %s271 = sld [smem:[#allocation2 + $0x26]]
    %v272 = vstv %s271
    %v273 = vmul.f32 %v26, %v272
    %v274 = vadd.f32 %v270, %v273
    %s275 = sld [smem:[#allocation2 + $0x46]]
    %v276 = vstv %s275
    %v277 = vmul.f32 %v28, %v276
    %v278 = vadd.f32 %v274, %v277
    %s279 = sld [smem:[#allocation2 + $0x66]]
    %v280 = vstv %s279
    %v281 = vmul.f32 %v30, %v280
    %v282 = vadd.f32 %v278, %v281
    %v283 = vtanh.pop %v282
    %s284 = sld [smem:[#allocation2 + $0xb8]]
    %v285 = vstv %s284
    %v286 = vmul.f32 %v283, %v285
    %v287 = vadd.f32 %v217, %v286
    %s288 = sld [smem:[#allocation2 + $0xb9]]
    %v289 = vstv %s288
    %v290 = vmul.f32 %v283, %v289
    %v291 = vadd.f32 %v221, %v290
    %s292 = sld [smem:[#allocation2 + $0xba]]
    %v293 = vstv %s292
    %v294 = vmul.f32 %v283, %v293
    %v295 = vadd.f32 %v225, %v294
    %s296 = sld [smem:[#allocation2 + $0xbb]]
    %v297 = vstv %s296
    %v298 = vmul.f32 %v283, %v297
    %v299 = vadd.f32 %v229, %v298
    %s300 = sld [smem:[#allocation2 + $0x7]]
    %v301 = vstv %s300
    %v302 = vmul.f32 %v24, %v301
    %s303 = sld [smem:[#allocation2 + $0x87]]
    %v304 = vstv %s303
    %v305 = vadd.f32 %v302, %v304
    %s306 = sld [smem:[#allocation2 + $0x27]]
    %v307 = vstv %s306
    %v308 = vmul.f32 %v26, %v307
    %v309 = vadd.f32 %v305, %v308
    %s310 = sld [smem:[#allocation2 + $0x47]]
    %v311 = vstv %s310
    %v312 = vmul.f32 %v28, %v311
    %v313 = vadd.f32 %v309, %v312
    %s314 = sld [smem:[#allocation2 + $0x67]]
    %v315 = vstv %s314
    %v316 = vmul.f32 %v30, %v315
    %v317 = vadd.f32 %v313, %v316
    %v318 = vtanh.pop %v317
    %s319 = sld [smem:[#allocation2 + $0xbc]]
    %v320 = vstv %s319
    %v321 = vmul.f32 %v318, %v320
    %v322 = vadd.f32 %v252, %v321
    %s323 = sld [smem:[#allocation2 + $0xbd]]
    %v324 = vstv %s323
    %v325 = vmul.f32 %v318, %v324
    %v326 = vadd.f32 %v256, %v325
    %s327 = sld [smem:[#allocation2 + $0xbe]]
    %v328 = vstv %s327
    %v329 = vmul.f32 %v318, %v328
    %v330 = vadd.f32 %v260, %v329
    %s331 = sld [smem:[#allocation2 + $0xbf]]
    %v332 = vstv %s331
    %v333 = vmul.f32 %v318, %v332
    %v334 = vadd.f32 %v264, %v333
    %s335 = sld [smem:[#allocation2 + $0x8]]
    %v336 = vstv %s335
    %v337 = vmul.f32 %v24, %v336
    %s338 = sld [smem:[#allocation2 + $0x88]]
    %v339 = vstv %s338
    %v340 = vadd.f32 %v337, %v339
    %s341 = sld [smem:[#allocation2 + $0x28]]
    %v342 = vstv %s341
    %v343 = vmul.f32 %v26, %v342
    %v344 = vadd.f32 %v340, %v343
    %s345 = sld [smem:[#allocation2 + $0x48]]
    %v346 = vstv %s345
    %v347 = vmul.f32 %v28, %v346
    %v348 = vadd.f32 %v344, %v347
    %s349 = sld [smem:[#allocation2 + $0x68]]
    %v350 = vstv %s349
    %v351 = vmul.f32 %v30, %v350
    %v352 = vadd.f32 %v348, %v351
    %v353 = vtanh.pop %v352
    %s354 = sld [smem:[#allocation2 + $0xc0]]
    %v355 = vstv %s354
    %v356 = vmul.f32 %v353, %v355
    %v357 = vadd.f32 %v287, %v356
    %s358 = sld [smem:[#allocation2 + $0xc1]]
    %v359 = vstv %s358
    %v360 = vmul.f32 %v353, %v359
    %v361 = vadd.f32 %v291, %v360
    %s362 = sld [smem:[#allocation2 + $0xc2]]
    %v363 = vstv %s362
    %v364 = vmul.f32 %v353, %v363
    %v365 = vadd.f32 %v295, %v364
    %s366 = sld [smem:[#allocation2 + $0xc3]]
    %v367 = vstv %s366
    %v368 = vmul.f32 %v353, %v367
    %v369 = vadd.f32 %v299, %v368
    %s370 = sld [smem:[#allocation2 + $0x9]]
    %v371 = vstv %s370
    %v372 = vmul.f32 %v24, %v371
    %s373 = sld [smem:[#allocation2 + $0x89]]
    %v374 = vstv %s373
    %v375 = vadd.f32 %v372, %v374
    %s376 = sld [smem:[#allocation2 + $0x29]]
    %v377 = vstv %s376
    %v378 = vmul.f32 %v26, %v377
    %v379 = vadd.f32 %v375, %v378
    %s380 = sld [smem:[#allocation2 + $0x49]]
    %v381 = vstv %s380
    %v382 = vmul.f32 %v28, %v381
    %v383 = vadd.f32 %v379, %v382
    %s384 = sld [smem:[#allocation2 + $0x69]]
    %v385 = vstv %s384
    %v386 = vmul.f32 %v30, %v385
    %v387 = vadd.f32 %v383, %v386
    %v388 = vtanh.pop %v387
    %s389 = sld [smem:[#allocation2 + $0xc4]]
    %v390 = vstv %s389
    %v391 = vmul.f32 %v388, %v390
    %v392 = vadd.f32 %v322, %v391
    %s393 = sld [smem:[#allocation2 + $0xc5]]
    %v394 = vstv %s393
    %v395 = vmul.f32 %v388, %v394
    %v396 = vadd.f32 %v326, %v395
    %s397 = sld [smem:[#allocation2 + $0xc6]]
    %v398 = vstv %s397
    %v399 = vmul.f32 %v388, %v398
    %v400 = vadd.f32 %v330, %v399
    %s401 = sld [smem:[#allocation2 + $0xc7]]
    %v402 = vstv %s401
    %v403 = vmul.f32 %v388, %v402
    %v404 = vadd.f32 %v334, %v403
    %s405 = sld [smem:[#allocation2 + $0xa]]
    %v406 = vstv %s405
    %v407 = vmul.f32 %v24, %v406
    %s408 = sld [smem:[#allocation2 + $0x8a]]
    %v409 = vstv %s408
    %v410 = vadd.f32 %v407, %v409
    %s411 = sld [smem:[#allocation2 + $0x2a]]
    %v412 = vstv %s411
    %v413 = vmul.f32 %v26, %v412
    %v414 = vadd.f32 %v410, %v413
    %s415 = sld [smem:[#allocation2 + $0x4a]]
    %v416 = vstv %s415
    %v417 = vmul.f32 %v28, %v416
    %v418 = vadd.f32 %v414, %v417
    %s419 = sld [smem:[#allocation2 + $0x6a]]
    %v420 = vstv %s419
    %v421 = vmul.f32 %v30, %v420
    %v422 = vadd.f32 %v418, %v421
    %v423 = vtanh.pop %v422
    %s424 = sld [smem:[#allocation2 + $0xc8]]
    %v425 = vstv %s424
    %v426 = vmul.f32 %v423, %v425
    %v427 = vadd.f32 %v357, %v426
    %s428 = sld [smem:[#allocation2 + $0xc9]]
    %v429 = vstv %s428
    %v430 = vmul.f32 %v423, %v429
    %v431 = vadd.f32 %v361, %v430
    %s432 = sld [smem:[#allocation2 + $0xca]]
    %v433 = vstv %s432
    %v434 = vmul.f32 %v423, %v433
    %v435 = vadd.f32 %v365, %v434
    %s436 = sld [smem:[#allocation2 + $0xcb]]
    %v437 = vstv %s436
    %v438 = vmul.f32 %v423, %v437
    %v439 = vadd.f32 %v369, %v438
    %s440 = sld [smem:[#allocation2 + $0xb]]
    %v441 = vstv %s440
    %v442 = vmul.f32 %v24, %v441
    %s443 = sld [smem:[#allocation2 + $0x8b]]
    %v444 = vstv %s443
    %v445 = vadd.f32 %v442, %v444
    %s446 = sld [smem:[#allocation2 + $0x2b]]
    %v447 = vstv %s446
    %v448 = vmul.f32 %v26, %v447
    %v449 = vadd.f32 %v445, %v448
    %s450 = sld [smem:[#allocation2 + $0x4b]]
    %v451 = vstv %s450
    %v452 = vmul.f32 %v28, %v451
    %v453 = vadd.f32 %v449, %v452
    %s454 = sld [smem:[#allocation2 + $0x6b]]
    %v455 = vstv %s454
    %v456 = vmul.f32 %v30, %v455
    %v457 = vadd.f32 %v453, %v456
    %v458 = vtanh.pop %v457
    %s459 = sld [smem:[#allocation2 + $0xcc]]
    %v460 = vstv %s459
    %v461 = vmul.f32 %v458, %v460
    %v462 = vadd.f32 %v392, %v461
    %s463 = sld [smem:[#allocation2 + $0xcd]]
    %v464 = vstv %s463
    %v465 = vmul.f32 %v458, %v464
    %v466 = vadd.f32 %v396, %v465
    %s467 = sld [smem:[#allocation2 + $0xce]]
    %v468 = vstv %s467
    %v469 = vmul.f32 %v458, %v468
    %v470 = vadd.f32 %v400, %v469
    %s471 = sld [smem:[#allocation2 + $0xcf]]
    %v472 = vstv %s471
    %v473 = vmul.f32 %v458, %v472
    %v474 = vadd.f32 %v404, %v473
    %s475 = sld [smem:[#allocation2 + $0xc]]
    %v476 = vstv %s475
    %v477 = vmul.f32 %v24, %v476
    %s478 = sld [smem:[#allocation2 + $0x8c]]
    %v479 = vstv %s478
    %v480 = vadd.f32 %v477, %v479
    %s481 = sld [smem:[#allocation2 + $0x2c]]
    %v482 = vstv %s481
    %v483 = vmul.f32 %v26, %v482
    %v484 = vadd.f32 %v480, %v483
    %s485 = sld [smem:[#allocation2 + $0x4c]]
    %v486 = vstv %s485
    %v487 = vmul.f32 %v28, %v486
    %v488 = vadd.f32 %v484, %v487
    %s489 = sld [smem:[#allocation2 + $0x6c]]
    %v490 = vstv %s489
    %v491 = vmul.f32 %v30, %v490
    %v492 = vadd.f32 %v488, %v491
    %v493 = vtanh.pop %v492
    %s494 = sld [smem:[#allocation2 + $0xd0]]
    %v495 = vstv %s494
    %v496 = vmul.f32 %v493, %v495
    %v497 = vadd.f32 %v427, %v496
    %s498 = sld [smem:[#allocation2 + $0xd1]]
    %v499 = vstv %s498
    %v500 = vmul.f32 %v493, %v499
    %v501 = vadd.f32 %v431, %v500
    %s502 = sld [smem:[#allocation2 + $0xd2]]
    %v503 = vstv %s502
    %v504 = vmul.f32 %v493, %v503
    %v505 = vadd.f32 %v435, %v504
    %s506 = sld [smem:[#allocation2 + $0xd3]]
    %v507 = vstv %s506
    %v508 = vmul.f32 %v493, %v507
    %v509 = vadd.f32 %v439, %v508
    %s510 = sld [smem:[#allocation2 + $0xd]]
    %v511 = vstv %s510
    %v512 = vmul.f32 %v24, %v511
    %s513 = sld [smem:[#allocation2 + $0x8d]]
    %v514 = vstv %s513
    %v515 = vadd.f32 %v512, %v514
    %s516 = sld [smem:[#allocation2 + $0x2d]]
    %v517 = vstv %s516
    %v518 = vmul.f32 %v26, %v517
    %v519 = vadd.f32 %v515, %v518
    %s520 = sld [smem:[#allocation2 + $0x4d]]
    %v521 = vstv %s520
    %v522 = vmul.f32 %v28, %v521
    %v523 = vadd.f32 %v519, %v522
    %s524 = sld [smem:[#allocation2 + $0x6d]]
    %v525 = vstv %s524
    %v526 = vmul.f32 %v30, %v525
    %v527 = vadd.f32 %v523, %v526
    %v528 = vtanh.pop %v527
    %s529 = sld [smem:[#allocation2 + $0xd4]]
    %v530 = vstv %s529
    %v531 = vmul.f32 %v528, %v530
    %v532 = vadd.f32 %v462, %v531
    %s533 = sld [smem:[#allocation2 + $0xd5]]
    %v534 = vstv %s533
    %v535 = vmul.f32 %v528, %v534
    %v536 = vadd.f32 %v466, %v535
    %s537 = sld [smem:[#allocation2 + $0xd6]]
    %v538 = vstv %s537
    %v539 = vmul.f32 %v528, %v538
    %v540 = vadd.f32 %v470, %v539
    %s541 = sld [smem:[#allocation2 + $0xd7]]
    %v542 = vstv %s541
    %v543 = vmul.f32 %v528, %v542
    %v544 = vadd.f32 %v474, %v543
    %s545 = sld [smem:[#allocation2 + $0xe]]
    %v546 = vstv %s545
    %v547 = vmul.f32 %v24, %v546
    %s548 = sld [smem:[#allocation2 + $0x8e]]
    %v549 = vstv %s548
    %v550 = vadd.f32 %v547, %v549
    %s551 = sld [smem:[#allocation2 + $0x2e]]
    %v552 = vstv %s551
    %v553 = vmul.f32 %v26, %v552
    %v554 = vadd.f32 %v550, %v553
    %s555 = sld [smem:[#allocation2 + $0x4e]]
    %v556 = vstv %s555
    %v557 = vmul.f32 %v28, %v556
    %v558 = vadd.f32 %v554, %v557
    %s559 = sld [smem:[#allocation2 + $0x6e]]
    %v560 = vstv %s559
    %v561 = vmul.f32 %v30, %v560
    %v562 = vadd.f32 %v558, %v561
    %v563 = vtanh.pop %v562
    %s564 = sld [smem:[#allocation2 + $0xd8]]
    %v565 = vstv %s564
    %v566 = vmul.f32 %v563, %v565
    %v567 = vadd.f32 %v497, %v566
    %s568 = sld [smem:[#allocation2 + $0xd9]]
    %v569 = vstv %s568
    %v570 = vmul.f32 %v563, %v569
    %v571 = vadd.f32 %v501, %v570
    %s572 = sld [smem:[#allocation2 + $0xda]]
    %v573 = vstv %s572
    %v574 = vmul.f32 %v563, %v573
    %v575 = vadd.f32 %v505, %v574
    %s576 = sld [smem:[#allocation2 + $0xdb]]
    %v577 = vstv %s576
    %v578 = vmul.f32 %v563, %v577
    %v579 = vadd.f32 %v509, %v578
    %s580 = sld [smem:[#allocation2 + $0xf]]
    %v581 = vstv %s580
    %v582 = vmul.f32 %v24, %v581
    %s583 = sld [smem:[#allocation2 + $0x8f]]
    %v584 = vstv %s583
    %v585 = vadd.f32 %v582, %v584
    %s586 = sld [smem:[#allocation2 + $0x2f]]
    %v587 = vstv %s586
    %v588 = vmul.f32 %v26, %v587
    %v589 = vadd.f32 %v585, %v588
    %s590 = sld [smem:[#allocation2 + $0x4f]]
    %v591 = vstv %s590
    %v592 = vmul.f32 %v28, %v591
    %v593 = vadd.f32 %v589, %v592
    %s594 = sld [smem:[#allocation2 + $0x6f]]
    %v595 = vstv %s594
    %v596 = vmul.f32 %v30, %v595
    %v597 = vadd.f32 %v593, %v596
    %v598 = vtanh.pop %v597
    %s599 = sld [smem:[#allocation2 + $0xdc]]
    %v600 = vstv %s599
    %v601 = vmul.f32 %v598, %v600
    %v602 = vadd.f32 %v532, %v601
    %s603 = sld [smem:[#allocation2 + $0xdd]]
    %v604 = vstv %s603
    %v605 = vmul.f32 %v598, %v604
    %v606 = vadd.f32 %v536, %v605
    %s607 = sld [smem:[#allocation2 + $0xde]]
    %v608 = vstv %s607
    %v609 = vmul.f32 %v598, %v608
    %v610 = vadd.f32 %v540, %v609
    %s611 = sld [smem:[#allocation2 + $0xdf]]
    %v612 = vstv %s611
    %v613 = vmul.f32 %v598, %v612
    %v614 = vadd.f32 %v544, %v613
    %s615 = sld [smem:[#allocation2 + $0x10]]
    %v616 = vstv %s615
    %v617 = vmul.f32 %v24, %v616
    %s618 = sld [smem:[#allocation2 + $0x90]]
    %v619 = vstv %s618
    %v620 = vadd.f32 %v617, %v619
    %s621 = sld [smem:[#allocation2 + $0x30]]
    %v622 = vstv %s621
    %v623 = vmul.f32 %v26, %v622
    %v624 = vadd.f32 %v620, %v623
    %s625 = sld [smem:[#allocation2 + $0x50]]
    %v626 = vstv %s625
    %v627 = vmul.f32 %v28, %v626
    %v628 = vadd.f32 %v624, %v627
    %s629 = sld [smem:[#allocation2 + $0x70]]
    %v630 = vstv %s629
    %v631 = vmul.f32 %v30, %v630
    %v632 = vadd.f32 %v628, %v631
    %v633 = vtanh.pop %v632
    %s634 = sld [smem:[#allocation2 + $0xe0]]
    %v635 = vstv %s634
    %v636 = vmul.f32 %v633, %v635
    %v637 = vadd.f32 %v567, %v636
    %s638 = sld [smem:[#allocation2 + $0xe1]]
    %v639 = vstv %s638
    %v640 = vmul.f32 %v633, %v639
    %v641 = vadd.f32 %v571, %v640
    %s642 = sld [smem:[#allocation2 + $0xe2]]
    %v643 = vstv %s642
    %v644 = vmul.f32 %v633, %v643
    %v645 = vadd.f32 %v575, %v644
    %s646 = sld [smem:[#allocation2 + $0xe3]]
    %v647 = vstv %s646
    %v648 = vmul.f32 %v633, %v647
    %v649 = vadd.f32 %v579, %v648
    %s650 = sld [smem:[#allocation2 + $0x11]]
    %v651 = vstv %s650
    %v652 = vmul.f32 %v24, %v651
    %s653 = sld [smem:[#allocation2 + $0x91]]
    %v654 = vstv %s653
    %v655 = vadd.f32 %v652, %v654
    %s656 = sld [smem:[#allocation2 + $0x31]]
    %v657 = vstv %s656
    %v658 = vmul.f32 %v26, %v657
    %v659 = vadd.f32 %v655, %v658
    %s660 = sld [smem:[#allocation2 + $0x51]]
    %v661 = vstv %s660
    %v662 = vmul.f32 %v28, %v661
    %v663 = vadd.f32 %v659, %v662
    %s664 = sld [smem:[#allocation2 + $0x71]]
    %v665 = vstv %s664
    %v666 = vmul.f32 %v30, %v665
    %v667 = vadd.f32 %v663, %v666
    %v668 = vtanh.pop %v667
    %s669 = sld [smem:[#allocation2 + $0xe4]]
    %v670 = vstv %s669
    %v671 = vmul.f32 %v668, %v670
    %v672 = vadd.f32 %v602, %v671
    %s673 = sld [smem:[#allocation2 + $0xe5]]
    %v674 = vstv %s673
    %v675 = vmul.f32 %v668, %v674
    %v676 = vadd.f32 %v606, %v675
    %s677 = sld [smem:[#allocation2 + $0xe6]]
    %v678 = vstv %s677
    %v679 = vmul.f32 %v668, %v678
    %v680 = vadd.f32 %v610, %v679
    %s681 = sld [smem:[#allocation2 + $0xe7]]
    %v682 = vstv %s681
    %v683 = vmul.f32 %v668, %v682
    %v684 = vadd.f32 %v614, %v683
    %s685 = sld [smem:[#allocation2 + $0x12]]
    %v686 = vstv %s685
    %v687 = vmul.f32 %v24, %v686
    %s688 = sld [smem:[#allocation2 + $0x92]]
    %v689 = vstv %s688
    %v690 = vadd.f32 %v687, %v689
    %s691 = sld [smem:[#allocation2 + $0x32]]
    %v692 = vstv %s691
    %v693 = vmul.f32 %v26, %v692
    %v694 = vadd.f32 %v690, %v693
    %s695 = sld [smem:[#allocation2 + $0x52]]
    %v696 = vstv %s695
    %v697 = vmul.f32 %v28, %v696
    %v698 = vadd.f32 %v694, %v697
    %s699 = sld [smem:[#allocation2 + $0x72]]
    %v700 = vstv %s699
    %v701 = vmul.f32 %v30, %v700
    %v702 = vadd.f32 %v698, %v701
    %v703 = vtanh.pop %v702
    %s704 = sld [smem:[#allocation2 + $0xe8]]
    %v705 = vstv %s704
    %v706 = vmul.f32 %v703, %v705
    %v707 = vadd.f32 %v637, %v706
    %s708 = sld [smem:[#allocation2 + $0xe9]]
    %v709 = vstv %s708
    %v710 = vmul.f32 %v703, %v709
    %v711 = vadd.f32 %v641, %v710
    %s712 = sld [smem:[#allocation2 + $0xea]]
    %v713 = vstv %s712
    %v714 = vmul.f32 %v703, %v713
    %v715 = vadd.f32 %v645, %v714
    %s716 = sld [smem:[#allocation2 + $0xeb]]
    %v717 = vstv %s716
    %v718 = vmul.f32 %v703, %v717
    %v719 = vadd.f32 %v649, %v718
    %s720 = sld [smem:[#allocation2 + $0x13]]
    %v721 = vstv %s720
    %v722 = vmul.f32 %v24, %v721
    %s723 = sld [smem:[#allocation2 + $0x93]]
    %v724 = vstv %s723
    %v725 = vadd.f32 %v722, %v724
    %s726 = sld [smem:[#allocation2 + $0x33]]
    %v727 = vstv %s726
    %v728 = vmul.f32 %v26, %v727
    %v729 = vadd.f32 %v725, %v728
    %s730 = sld [smem:[#allocation2 + $0x53]]
    %v731 = vstv %s730
    %v732 = vmul.f32 %v28, %v731
    %v733 = vadd.f32 %v729, %v732
    %s734 = sld [smem:[#allocation2 + $0x73]]
    %v735 = vstv %s734
    %v736 = vmul.f32 %v30, %v735
    %v737 = vadd.f32 %v733, %v736
    %v738 = vtanh.pop %v737
    %s739 = sld [smem:[#allocation2 + $0xec]]
    %v740 = vstv %s739
    %v741 = vmul.f32 %v738, %v740
    %v742 = vadd.f32 %v672, %v741
    %s743 = sld [smem:[#allocation2 + $0xed]]
    %v744 = vstv %s743
    %v745 = vmul.f32 %v738, %v744
    %v746 = vadd.f32 %v676, %v745
    %s747 = sld [smem:[#allocation2 + $0xee]]
    %v748 = vstv %s747
    %v749 = vmul.f32 %v738, %v748
    %v750 = vadd.f32 %v680, %v749
    %s751 = sld [smem:[#allocation2 + $0xef]]
    %v752 = vstv %s751
    %v753 = vmul.f32 %v738, %v752
    %v754 = vadd.f32 %v684, %v753
    %s755 = sld [smem:[#allocation2 + $0x14]]
    %v756 = vstv %s755
    %v757 = vmul.f32 %v24, %v756
    %s758 = sld [smem:[#allocation2 + $0x94]]
    %v759 = vstv %s758
    %v760 = vadd.f32 %v757, %v759
    %s761 = sld [smem:[#allocation2 + $0x34]]
    %v762 = vstv %s761
    %v763 = vmul.f32 %v26, %v762
    %v764 = vadd.f32 %v760, %v763
    %s765 = sld [smem:[#allocation2 + $0x54]]
    %v766 = vstv %s765
    %v767 = vmul.f32 %v28, %v766
    %v768 = vadd.f32 %v764, %v767
    %s769 = sld [smem:[#allocation2 + $0x74]]
    %v770 = vstv %s769
    %v771 = vmul.f32 %v30, %v770
    %v772 = vadd.f32 %v768, %v771
    %v773 = vtanh.pop %v772
    %s774 = sld [smem:[#allocation2 + $0xf0]]
    %v775 = vstv %s774
    %v776 = vmul.f32 %v773, %v775
    %v777 = vadd.f32 %v707, %v776
    %s778 = sld [smem:[#allocation2 + $0xf1]]
    %v779 = vstv %s778
    %v780 = vmul.f32 %v773, %v779
    %v781 = vadd.f32 %v711, %v780
    %s782 = sld [smem:[#allocation2 + $0xf2]]
    %v783 = vstv %s782
    %v784 = vmul.f32 %v773, %v783
    %v785 = vadd.f32 %v715, %v784
    %s786 = sld [smem:[#allocation2 + $0xf3]]
    %v787 = vstv %s786
    %v788 = vmul.f32 %v773, %v787
    %v789 = vadd.f32 %v719, %v788
    %s790 = sld [smem:[#allocation2 + $0x15]]
    %v791 = vstv %s790
    %v792 = vmul.f32 %v24, %v791
    %s793 = sld [smem:[#allocation2 + $0x95]]
    %v794 = vstv %s793
    %v795 = vadd.f32 %v792, %v794
    %s796 = sld [smem:[#allocation2 + $0x35]]
    %v797 = vstv %s796
    %v798 = vmul.f32 %v26, %v797
    %v799 = vadd.f32 %v795, %v798
    %s800 = sld [smem:[#allocation2 + $0x55]]
    %v801 = vstv %s800
    %v802 = vmul.f32 %v28, %v801
    %v803 = vadd.f32 %v799, %v802
    %s804 = sld [smem:[#allocation2 + $0x75]]
    %v805 = vstv %s804
    %v806 = vmul.f32 %v30, %v805
    %v807 = vadd.f32 %v803, %v806
    %v808 = vtanh.pop %v807
    %s809 = sld [smem:[#allocation2 + $0xf4]]
    %v810 = vstv %s809
    %v811 = vmul.f32 %v808, %v810
    %v812 = vadd.f32 %v742, %v811
    %s813 = sld [smem:[#allocation2 + $0xf5]]
    %v814 = vstv %s813
    %v815 = vmul.f32 %v808, %v814
    %v816 = vadd.f32 %v746, %v815
    %s817 = sld [smem:[#allocation2 + $0xf6]]
    %v818 = vstv %s817
    %v819 = vmul.f32 %v808, %v818
    %v820 = vadd.f32 %v750, %v819
    %s821 = sld [smem:[#allocation2 + $0xf7]]
    %v822 = vstv %s821
    %v823 = vmul.f32 %v808, %v822
    %v824 = vadd.f32 %v754, %v823
    %s825 = sld [smem:[#allocation2 + $0x16]]
    %v826 = vstv %s825
    %v827 = vmul.f32 %v24, %v826
    %s828 = sld [smem:[#allocation2 + $0x96]]
    %v829 = vstv %s828
    %v830 = vadd.f32 %v827, %v829
    %s831 = sld [smem:[#allocation2 + $0x36]]
    %v832 = vstv %s831
    %v833 = vmul.f32 %v26, %v832
    %v834 = vadd.f32 %v830, %v833
    %s835 = sld [smem:[#allocation2 + $0x56]]
    %v836 = vstv %s835
    %v837 = vmul.f32 %v28, %v836
    %v838 = vadd.f32 %v834, %v837
    %s839 = sld [smem:[#allocation2 + $0x76]]
    %v840 = vstv %s839
    %v841 = vmul.f32 %v30, %v840
    %v842 = vadd.f32 %v838, %v841
    %v843 = vtanh.pop %v842
    %s844 = sld [smem:[#allocation2 + $0xf8]]
    %v845 = vstv %s844
    %v846 = vmul.f32 %v843, %v845
    %v847 = vadd.f32 %v777, %v846
    %s848 = sld [smem:[#allocation2 + $0xf9]]
    %v849 = vstv %s848
    %v850 = vmul.f32 %v843, %v849
    %v851 = vadd.f32 %v781, %v850
    %s852 = sld [smem:[#allocation2 + $0xfa]]
    %v853 = vstv %s852
    %v854 = vmul.f32 %v843, %v853
    %v855 = vadd.f32 %v785, %v854
    %s856 = sld [smem:[#allocation2 + $0xfb]]
    %v857 = vstv %s856
    %v858 = vmul.f32 %v843, %v857
    %v859 = vadd.f32 %v789, %v858
    %s860 = sld [smem:[#allocation2 + $0x17]]
    %v861 = vstv %s860
    %v862 = vmul.f32 %v24, %v861
    %s863 = sld [smem:[#allocation2 + $0x97]]
    %v864 = vstv %s863
    %v865 = vadd.f32 %v862, %v864
    %s866 = sld [smem:[#allocation2 + $0x37]]
    %v867 = vstv %s866
    %v868 = vmul.f32 %v26, %v867
    %v869 = vadd.f32 %v865, %v868
    %s870 = sld [smem:[#allocation2 + $0x57]]
    %v871 = vstv %s870
    %v872 = vmul.f32 %v28, %v871
    %v873 = vadd.f32 %v869, %v872
    %s874 = sld [smem:[#allocation2 + $0x77]]
    %v875 = vstv %s874
    %v876 = vmul.f32 %v30, %v875
    %v877 = vadd.f32 %v873, %v876
    %v878 = vtanh.pop %v877
    %s879 = sld [smem:[#allocation2 + $0xfc]]
    %v880 = vstv %s879
    %v881 = vmul.f32 %v878, %v880
    %v882 = vadd.f32 %v812, %v881
    %s883 = sld [smem:[#allocation2 + $0xfd]]
    %v884 = vstv %s883
    %v885 = vmul.f32 %v878, %v884
    %v886 = vadd.f32 %v816, %v885
    %s887 = sld [smem:[#allocation2 + $0xfe]]
    %v888 = vstv %s887
    %v889 = vmul.f32 %v878, %v888
    %v890 = vadd.f32 %v820, %v889
    %s891 = sld [smem:[#allocation2 + $0xff]]
    %v892 = vstv %s891
    %v893 = vmul.f32 %v878, %v892
    %v894 = vadd.f32 %v824, %v893
    %s895 = sld [smem:[#allocation2 + $0x18]]
    %v896 = vstv %s895
    %v897 = vmul.f32 %v24, %v896
    %s898 = sld [smem:[#allocation2 + $0x98]]
    %v899 = vstv %s898
    %v900 = vadd.f32 %v897, %v899
    %s901 = sld [smem:[#allocation2 + $0x38]]
    %v902 = vstv %s901
    %v903 = vmul.f32 %v26, %v902
    %v904 = vadd.f32 %v900, %v903
    %s905 = sld [smem:[#allocation2 + $0x58]]
    %v906 = vstv %s905
    %v907 = vmul.f32 %v28, %v906
    %v908 = vadd.f32 %v904, %v907
    %s909 = sld [smem:[#allocation2 + $0x78]]
    %v910 = vstv %s909
    %v911 = vmul.f32 %v30, %v910
    %v912 = vadd.f32 %v908, %v911
    %v913 = vtanh.pop %v912
    %s914 = sld [smem:[#allocation2 + $0x100]]
    %v915 = vstv %s914
    %v916 = vmul.f32 %v913, %v915
    %v917 = vadd.f32 %v847, %v916
    %s918 = sld [smem:[#allocation2 + $0x101]]
    %v919 = vstv %s918
    %v920 = vmul.f32 %v913, %v919
    %v921 = vadd.f32 %v851, %v920
    %s922 = sld [smem:[#allocation2 + $0x102]]
    %v923 = vstv %s922
    %v924 = vmul.f32 %v913, %v923
    %v925 = vadd.f32 %v855, %v924
    %s926 = sld [smem:[#allocation2 + $0x103]]
    %v927 = vstv %s926
    %v928 = vmul.f32 %v913, %v927
    %v929 = vadd.f32 %v859, %v928
    %s930 = sld [smem:[#allocation2 + $0x19]]
    %v931 = vstv %s930
    %v932 = vmul.f32 %v24, %v931
    %s933 = sld [smem:[#allocation2 + $0x99]]
    %v934 = vstv %s933
    %v935 = vadd.f32 %v932, %v934
    %s936 = sld [smem:[#allocation2 + $0x39]]
    %v937 = vstv %s936
    %v938 = vmul.f32 %v26, %v937
    %v939 = vadd.f32 %v935, %v938
    %s940 = sld [smem:[#allocation2 + $0x59]]
    %v941 = vstv %s940
    %v942 = vmul.f32 %v28, %v941
    %v943 = vadd.f32 %v939, %v942
    %s944 = sld [smem:[#allocation2 + $0x79]]
    %v945 = vstv %s944
    %v946 = vmul.f32 %v30, %v945
    %v947 = vadd.f32 %v943, %v946
    %v948 = vtanh.pop %v947
    %s949 = sld [smem:[#allocation2 + $0x104]]
    %v950 = vstv %s949
    %v951 = vmul.f32 %v948, %v950
    %v952 = vadd.f32 %v882, %v951
    %s953 = sld [smem:[#allocation2 + $0x105]]
    %v954 = vstv %s953
    %v955 = vmul.f32 %v948, %v954
    %v956 = vadd.f32 %v886, %v955
    %s957 = sld [smem:[#allocation2 + $0x106]]
    %v958 = vstv %s957
    %v959 = vmul.f32 %v948, %v958
    %v960 = vadd.f32 %v890, %v959
    %s961 = sld [smem:[#allocation2 + $0x107]]
    %v962 = vstv %s961
    %v963 = vmul.f32 %v948, %v962
    %v964 = vadd.f32 %v894, %v963
    %s965 = sld [smem:[#allocation2 + $0x1a]]
    %v966 = vstv %s965
    %v967 = vmul.f32 %v24, %v966
    %s968 = sld [smem:[#allocation2 + $0x9a]]
    %v969 = vstv %s968
    %v970 = vadd.f32 %v967, %v969
    %s971 = sld [smem:[#allocation2 + $0x3a]]
    %v972 = vstv %s971
    %v973 = vmul.f32 %v26, %v972
    %v974 = vadd.f32 %v970, %v973
    %s975 = sld [smem:[#allocation2 + $0x5a]]
    %v976 = vstv %s975
    %v977 = vmul.f32 %v28, %v976
    %v978 = vadd.f32 %v974, %v977
    %s979 = sld [smem:[#allocation2 + $0x7a]]
    %v980 = vstv %s979
    %v981 = vmul.f32 %v30, %v980
    %v982 = vadd.f32 %v978, %v981
    %v983 = vtanh.pop %v982
    %s984 = sld [smem:[#allocation2 + $0x108]]
    %v985 = vstv %s984
    %v986 = vmul.f32 %v983, %v985
    %v987 = vadd.f32 %v917, %v986
    %s988 = sld [smem:[#allocation2 + $0x109]]
    %v989 = vstv %s988
    %v990 = vmul.f32 %v983, %v989
    %v991 = vadd.f32 %v921, %v990
    %s992 = sld [smem:[#allocation2 + $0x10a]]
    %v993 = vstv %s992
    %v994 = vmul.f32 %v983, %v993
    %v995 = vadd.f32 %v925, %v994
    %s996 = sld [smem:[#allocation2 + $0x10b]]
    %v997 = vstv %s996
    %v998 = vmul.f32 %v983, %v997
    %v999 = vadd.f32 %v929, %v998
    %s1000 = sld [smem:[#allocation2 + $0x1b]]
    %v1001 = vstv %s1000
    %v1002 = vmul.f32 %v24, %v1001
    %s1003 = sld [smem:[#allocation2 + $0x9b]]
    %v1004 = vstv %s1003
    %v1005 = vadd.f32 %v1002, %v1004
    %s1006 = sld [smem:[#allocation2 + $0x3b]]
    %v1007 = vstv %s1006
    %v1008 = vmul.f32 %v26, %v1007
    %v1009 = vadd.f32 %v1005, %v1008
    %s1010 = sld [smem:[#allocation2 + $0x5b]]
    %v1011 = vstv %s1010
    %v1012 = vmul.f32 %v28, %v1011
    %v1013 = vadd.f32 %v1009, %v1012
    %s1014 = sld [smem:[#allocation2 + $0x7b]]
    %v1015 = vstv %s1014
    %v1016 = vmul.f32 %v30, %v1015
    %v1017 = vadd.f32 %v1013, %v1016
    %v1018 = vtanh.pop %v1017
    %s1019 = sld [smem:[#allocation2 + $0x10c]]
    %v1020 = vstv %s1019
    %v1021 = vmul.f32 %v1018, %v1020
    %v1022 = vadd.f32 %v952, %v1021
    %s1023 = sld [smem:[#allocation2 + $0x10d]]
    %v1024 = vstv %s1023
    %v1025 = vmul.f32 %v1018, %v1024
    %v1026 = vadd.f32 %v956, %v1025
    %s1027 = sld [smem:[#allocation2 + $0x10e]]
    %v1028 = vstv %s1027
    %v1029 = vmul.f32 %v1018, %v1028
    %v1030 = vadd.f32 %v960, %v1029
    %s1031 = sld [smem:[#allocation2 + $0x10f]]
    %v1032 = vstv %s1031
    %v1033 = vmul.f32 %v1018, %v1032
    %v1034 = vadd.f32 %v964, %v1033
    %s1035 = sld [smem:[#allocation2 + $0x1c]]
    %v1036 = vstv %s1035
    %v1037 = vmul.f32 %v24, %v1036
    %s1038 = sld [smem:[#allocation2 + $0x9c]]
    %v1039 = vstv %s1038
    %v1040 = vadd.f32 %v1037, %v1039
    %s1041 = sld [smem:[#allocation2 + $0x3c]]
    %v1042 = vstv %s1041
    %v1043 = vmul.f32 %v26, %v1042
    %v1044 = vadd.f32 %v1040, %v1043
    %s1045 = sld [smem:[#allocation2 + $0x5c]]
    %v1046 = vstv %s1045
    %v1047 = vmul.f32 %v28, %v1046
    %v1048 = vadd.f32 %v1044, %v1047
    %s1049 = sld [smem:[#allocation2 + $0x7c]]
    %v1050 = vstv %s1049
    %v1051 = vmul.f32 %v30, %v1050
    %v1052 = vadd.f32 %v1048, %v1051
    %v1053 = vtanh.pop %v1052
    %s1054 = sld [smem:[#allocation2 + $0x110]]
    %v1055 = vstv %s1054
    %v1056 = vmul.f32 %v1053, %v1055
    %v1057 = vadd.f32 %v987, %v1056
    %s1058 = sld [smem:[#allocation2 + $0x111]]
    %v1059 = vstv %s1058
    %v1060 = vmul.f32 %v1053, %v1059
    %v1061 = vadd.f32 %v991, %v1060
    %s1062 = sld [smem:[#allocation2 + $0x112]]
    %v1063 = vstv %s1062
    %v1064 = vmul.f32 %v1053, %v1063
    %v1065 = vadd.f32 %v995, %v1064
    %s1066 = sld [smem:[#allocation2 + $0x113]]
    %v1067 = vstv %s1066
    %v1068 = vmul.f32 %v1053, %v1067
    %v1069 = vadd.f32 %v999, %v1068
    %s1070 = sld [smem:[#allocation2 + $0x1d]]
    %v1071 = vstv %s1070
    %v1072 = vmul.f32 %v24, %v1071
    %s1073 = sld [smem:[#allocation2 + $0x9d]]
    %v1074 = vstv %s1073
    %v1075 = vadd.f32 %v1072, %v1074
    %s1076 = sld [smem:[#allocation2 + $0x3d]]
    %v1077 = vstv %s1076
    %v1078 = vmul.f32 %v26, %v1077
    %v1079 = vadd.f32 %v1075, %v1078
    %s1080 = sld [smem:[#allocation2 + $0x5d]]
    %v1081 = vstv %s1080
    %v1082 = vmul.f32 %v28, %v1081
    %v1083 = vadd.f32 %v1079, %v1082
    %s1084 = sld [smem:[#allocation2 + $0x7d]]
    %v1085 = vstv %s1084
    %v1086 = vmul.f32 %v30, %v1085
    %v1087 = vadd.f32 %v1083, %v1086
    %v1088 = vtanh.pop %v1087
    %s1089 = sld [smem:[#allocation2 + $0x114]]
    %v1090 = vstv %s1089
    %v1091 = vmul.f32 %v1088, %v1090
    %v1092 = vadd.f32 %v1022, %v1091
    %s1093 = sld [smem:[#allocation2 + $0x115]]
    %v1094 = vstv %s1093
    %v1095 = vmul.f32 %v1088, %v1094
    %v1096 = vadd.f32 %v1026, %v1095
    %s1097 = sld [smem:[#allocation2 + $0x116]]
    %v1098 = vstv %s1097
    %v1099 = vmul.f32 %v1088, %v1098
    %v1100 = vadd.f32 %v1030, %v1099
    %s1101 = sld [smem:[#allocation2 + $0x117]]
    %v1102 = vstv %s1101
    %v1103 = vmul.f32 %v1088, %v1102
    %v1104 = vadd.f32 %v1034, %v1103
    %s1105 = sld [smem:[#allocation2 + $0x1e]]
    %v1106 = vstv %s1105
    %v1107 = vmul.f32 %v24, %v1106
    %s1108 = sld [smem:[#allocation2 + $0x9e]]
    %v1109 = vstv %s1108
    %v1110 = vadd.f32 %v1107, %v1109
    %s1111 = sld [smem:[#allocation2 + $0x3e]]
    %v1112 = vstv %s1111
    %v1113 = vmul.f32 %v26, %v1112
    %v1114 = vadd.f32 %v1110, %v1113
    %s1115 = sld [smem:[#allocation2 + $0x5e]]
    %v1116 = vstv %s1115
    %v1117 = vmul.f32 %v28, %v1116
    %v1118 = vadd.f32 %v1114, %v1117
    %s1119 = sld [smem:[#allocation2 + $0x7e]]
    %v1120 = vstv %s1119
    %v1121 = vmul.f32 %v30, %v1120
    %v1122 = vadd.f32 %v1118, %v1121
    %v1123 = vtanh.pop %v1122
    %s1124 = sld [smem:[#allocation2 + $0x118]]
    %v1125 = vstv %s1124
    %v1126 = vmul.f32 %v1123, %v1125
    %v1127 = vadd.f32 %v1057, %v1126
    %s1128 = sld [smem:[#allocation2 + $0x119]]
    %v1129 = vstv %s1128
    %v1130 = vmul.f32 %v1123, %v1129
    %v1131 = vadd.f32 %v1061, %v1130
    %s1132 = sld [smem:[#allocation2 + $0x11a]]
    %v1133 = vstv %s1132
    %v1134 = vmul.f32 %v1123, %v1133
    %v1135 = vadd.f32 %v1065, %v1134
    %s1136 = sld [smem:[#allocation2 + $0x11b]]
    %v1137 = vstv %s1136
    %v1138 = vmul.f32 %v1123, %v1137
    %v1139 = vadd.f32 %v1069, %v1138
    %s1140 = sld [smem:[#allocation2 + $0x1f]]
    %v1141 = vstv %s1140
    %v1142 = vmul.f32 %v24, %v1141
    %s1143 = sld [smem:[#allocation2 + $0x9f]]
    %v1144 = vstv %s1143
    %v1145 = vadd.f32 %v1142, %v1144
    %s1146 = sld [smem:[#allocation2 + $0x3f]]
    %v1147 = vstv %s1146
    %v1148 = vmul.f32 %v26, %v1147
    %v1149 = vadd.f32 %v1145, %v1148
    %s1150 = sld [smem:[#allocation2 + $0x5f]]
    %v1151 = vstv %s1150
    %v1152 = vmul.f32 %v28, %v1151
    %v1153 = vadd.f32 %v1149, %v1152
    %s1154 = sld [smem:[#allocation2 + $0x7f]]
    %v1155 = vstv %s1154
    %v1156 = vmul.f32 %v30, %v1155
    %v1157 = vadd.f32 %v1153, %v1156
    %v1158 = vtanh.pop %v1157
    %s1159 = sld [smem:[#allocation2 + $0x11c]]
    %v1160 = vstv %s1159
    %v1161 = vmul.f32 %v1158, %v1160
    %v1162 = vadd.f32 %v1092, %v1161
    %s1163 = sld [smem:[#allocation2 + $0x11d]]
    %v1164 = vstv %s1163
    %v1165 = vmul.f32 %v1158, %v1164
    %v1166 = vadd.f32 %v1096, %v1165
    %s1167 = sld [smem:[#allocation2 + $0x11e]]
    %v1168 = vstv %s1167
    %v1169 = vmul.f32 %v1158, %v1168
    %v1170 = vadd.f32 %v1100, %v1169
    %s1171 = sld [smem:[#allocation2 + $0x11f]]
    %v1172 = vstv %s1171
    %v1173 = vmul.f32 %v1158, %v1172
    %v1174 = vadd.f32 %v1104, %v1173
    %v1175 = vadd.f32 %v1127, %v1162
    %1176 = vst [vmem:[%s2] sm:$0xff] %v1175
    %v1177 = vadd.f32 %v1131, %v1166
    %s1178 = scalar_lea.vmem %s2, 8
    %1179 = vst [vmem:[%s1178] sm:$0xff] %v1177
    %v1180 = vadd.f32 %v1135, %v1170
    %s1181 = scalar_lea.vmem %s2, 16
    %1182 = vst [vmem:[%s1181] sm:$0xff] %v1180
    %v1183 = vadd.f32 %v1139, %v1174
    %s1184 = scalar_lea.vmem %s2, 24
    %1185 = vst [vmem:[%s1184] sm:$0xff] %v1183
    // Predicated region
    $region14: #{_hybrid_dynamics_impl.1} parent=1 // pred_check
      _
    $region15: #{_hybrid_dynamics_impl.1} parent=1 // pred_check_branch
      %1187 = sbr.rel (0) target = $region17
    $region16: #{_hybrid_dynamics_impl.1} parent=1 // pred_region
      _
    $region17: #{_hybrid_dynamics_impl.1} parent=1 // pred_fallthru
      _
    // Predicated region
    $region18: #{_hybrid_dynamics_impl.1} parent=1 // pred_check
      _
    $region19: #{_hybrid_dynamics_impl.1} parent=1 // pred_check_branch
      %1189 = sbr.rel (0) target = $region21
    $region20: #{_hybrid_dynamics_impl.1} parent=1 // pred_region
      _
    $region21: #{_hybrid_dynamics_impl.1} parent=1 // pred_fallthru
      _
    %1190 = vsyncpa [#allocation3], 1

</llo_original>
